<compile_context>
chip_gen: v7x
topology: tpu7x:2x2x1
jax: 0.10.0
libtpu: 0.0.40
codegen_flags: <defaults>
</compile_context>

<pallas_src>
import functools

import jax
import jax.numpy as jnp
from jax.experimental import pallas as pl
from jax.experimental.pallas import tpu as pltpu

# ---------------- config (small, consistent with a Llama decoder layer) ----------------
HIDDEN = 32          # hidden_size
N_HEADS = 4          # num_attention_heads
N_KV_HEADS = 2       # num_key_value_heads (GQA)
HEAD_DIM = HIDDEN // N_HEADS   # 8
INTER = 64           # intermediate_size
SEQ = 8
BATCH = 2
N_LAYERS = 2         # end_layer_idx - start_layer_idx
EPS = 1e-6
ROPE_BASE = 10000.0

Q_W = N_HEADS * HEAD_DIM            # 32
KV_W = N_KV_HEADS * HEAD_DIM        # 16
QKV_W = Q_W + 2 * KV_W              # 64
ROT_W = Q_W + KV_W                  # 48  (Q|K lanes that receive RoPE)
GROUP = N_HEADS // N_KV_HEADS       # 2
NEG_INF = -1e30


def _rms_norm(x, w):
    var = jnp.mean(x * x, axis=-1, keepdims=True)
    return x * jax.lax.rsqrt(var + EPS) * w


# ------------------------------- per-layer fused kernel --------------------------------
def decoder_layer_kernel(x_ref, cos_ref, sin_ref, rot_ref,
                         ln1_ref, wqkv_ref, wo_ref,
                         ln2_ref, wgu_ref, wd_ref,
                         out_ref, kv_ref, *, batch, seq):
    layer = pl.program_id(0)

    # Layer 0: seed the resident hidden-state block (constant-index output block is the
    # cross-layer carry; HBM writeback happens only once, after the last grid step).
    @pl.when(layer == 0)
    def _():
        out_ref[...] = x_ref[...]

    x = out_ref[...]                                    # (B*S, D) f32, VMEM resident

    # causal mask (cheap iota + compare, shared by every head)
    row = jax.lax.broadcasted_iota(jnp.int32, (1, seq, seq), 1)
    col = jax.lax.broadcasted_iota(jnp.int32, (1, seq, seq), 2)
    causal = row >= col

    # ---------------- self-attention block ----------------
    h = _rms_norm(x, ln1_ref[0])
    qkv = jnp.dot(h.astype(jnp.bfloat16), wqkv_ref[0],
                  preferred_element_type=jnp.float32)             # (BS, Q_W+2*KV_W)
    qk = qkv[:, :ROT_W]                                           # Q|K lanes (get RoPE)
    v = qkv[:, ROT_W:]                                            # V lanes (pass-through)

    # RoPE: rotate_half via one tiny shared block-diagonal matmul (layout-safe for the
    # toy head_dim=8), then combine with cos/sin on the VPU.  1/sqrt(hd) folded into Wq.
    qk_rot = jnp.dot(qk.astype(jnp.bfloat16), rot_ref[...],
                     preferred_element_type=jnp.float32)          # (BS, ROT_W)
    qk = qk * cos_ref[...] + qk_rot * sin_ref[...]

    q = qk[:, :Q_W]                                               # (BS, H*hd)   rotated
    k = qk[:, Q_W:]                                               # (BS, KVH*hd) rotated

    # KV cache writeback: one lane-merged bf16 [K | V] slab for this layer.
    kv_ref[0, :, :KV_W] = k.astype(jnp.bfloat16)
    kv_ref[0, :, KV_W:] = v.astype(jnp.bfloat16)

    # ---- head-batched attention: one score matmul / softmax / PV for ALL heads ----
    q_heads = [q[:, i * HEAD_DIM:(i + 1) * HEAD_DIM].reshape(batch, seq, HEAD_DIM)
               for i in range(N_HEADS)]
    k_heads = [k[:, i * HEAD_DIM:(i + 1) * HEAD_DIM].reshape(batch, seq, HEAD_DIM)
               for i in range(N_KV_HEADS)]
    v_heads = [v[:, i * HEAD_DIM:(i + 1) * HEAD_DIM].reshape(batch, seq, HEAD_DIM)
               for i in range(N_KV_HEADS)]
    qh = jnp.concatenate(q_heads, axis=0).astype(jnp.bfloat16)             # (H*B, S, hd)
    kh = jnp.concatenate([k_heads[i // GROUP] for i in range(N_HEADS)],
                         axis=0).astype(jnp.bfloat16)                      # GQA broadcast
    vh = jnp.concatenate([v_heads[i // GROUP] for i in range(N_HEADS)],
                         axis=0).astype(jnp.bfloat16)

    s = jnp.einsum('nqd,nkd->nqk', qh, kh,
                   preferred_element_type=jnp.float32)                     # (H*B, S, S)
    s = jnp.where(causal, s, NEG_INF)
    m = jnp.max(s, axis=-1, keepdims=True)
    p = jnp.exp(s - m)
    denom = jnp.sum(p, axis=-1, keepdims=True)
    p = p * pl.reciprocal(denom, approx=True)                              # EUP, no divide
    o = jnp.einsum('nqk,nkd->nqd', p.astype(jnp.bfloat16), vh,
                   preferred_element_type=jnp.float32)                     # (H*B, S, hd)

    # Output projection with the head concat folded in:  attn_out = sum_h o_h @ Wo[h].
    # No VMEM scratch round trip and no cross-lane reassembly.
    wo_w = wo_ref[0]
    attn_out = jnp.zeros((batch * seq, HIDDEN), jnp.float32)
    for i in range(N_HEADS):
        o_i = o[i * batch:(i + 1) * batch].reshape(batch * seq, HEAD_DIM)
        attn_out = attn_out + jnp.dot(
            o_i.astype(jnp.bfloat16),
            wo_w[i * HEAD_DIM:(i + 1) * HEAD_DIM, :],
            preferred_element_type=jnp.float32)
    x = x + attn_out

    # ---------------- MLP (SwiGLU) block ----------------
    h2 = _rms_norm(x, ln2_ref[0])
    gu = jnp.dot(h2.astype(jnp.bfloat16), wgu_ref[0],
                 preferred_element_type=jnp.float32)                       # (BS, 2*INTER)
    gate = gu[:, :INTER]
    up = gu[:, INTER:]
    act = gate * jax.nn.sigmoid(gate) * up                                 # SiLU(g) * u
    x = x + jnp.dot(act.astype(jnp.bfloat16), wd_ref[0],
                    preferred_element_type=jnp.float32)

    out_ref[...] = x


# ------------------------------ host-side weight packing -------------------------------
def pack_params(params):
    """Stack per-layer weights, fuse QKV (scale folded into Wq) and gate/up, cast to bf16."""
    scale = 1.0 / (HEAD_DIM ** 0.5)

    def qkv(p):
        return jnp.concatenate([p["wq"] * scale, p["wk"], p["wv"]], axis=1)   # (D, QKV_W)

    return dict(
        ln1=jnp.stack([p["ln1"] for p in params]).astype(jnp.float32),        # (L, 1, D)
        ln2=jnp.stack([p["ln2"] for p in params]).astype(jnp.float32),
        wqkv=jnp.stack([qkv(p) for p in params]).astype(jnp.bfloat16),        # (L, D, 64)
        wo=jnp.stack([p["wo"] for p in params]).astype(jnp.bfloat16),         # (L, 32, D)
        wgu=jnp.stack([jnp.concatenate([p["wg"], p["wu"]], axis=1)
                       for p in params]).astype(jnp.bfloat16),                # (L, D, 128)
        wd=jnp.stack([p["wd"] for p in params]).astype(jnp.bfloat16),         # (L, 64, D)
    )


def build_rotate_half_matrix():
    """(ROT_W, ROT_W) block-diagonal matrix R with  x @ R == rotate_half(x)  per head."""
    half = HEAD_DIM // 2
    eye = jnp.eye(half, dtype=jnp.float32)
    zero = jnp.zeros((half, half), jnp.float32)
    r = jnp.block([[zero, eye], [-eye, zero]])                # (hd, hd)
    big = jnp.kron(jnp.eye(N_HEADS + N_KV_HEADS, dtype=jnp.float32), r)
    return big.astype(jnp.bfloat16)


def build_rope_tables(cos, sin, batch):
    """Tile cos/sin across rows (B*S) and across the Q|K heads only (no V padding)."""
    cos_rows = jnp.tile(cos, (batch, 1))                      # (B*S, hd); row b*S+s -> pos s
    sin_rows = jnp.tile(sin, (batch, 1))
    n_rot = N_HEADS + N_KV_HEADS
    cos_t = jnp.tile(cos_rows, (1, n_rot))                    # (B*S, ROT_W)
    sin_t = jnp.tile(sin_rows, (1, n_rot))
    return cos_t.astype(jnp.float32), sin_t.astype(jnp.float32)


def _cost_estimate(n_layers, batch, seq):
    bs = batch * seq
    mm = 2 * bs * (HIDDEN * QKV_W + ROT_W * ROT_W + Q_W * HIDDEN
                   + HIDDEN * 2 * INTER + INTER * HIDDEN)
    attn = 2 * 2 * batch * N_HEADS * seq * seq * HEAD_DIM
    flops = n_layers * (mm + attn)
    transcendentals = n_layers * (batch * N_HEADS * seq * seq + bs * INTER + 2 * bs)
    w_bytes = n_layers * (2 * (HIDDEN * QKV_W + Q_W * HIDDEN
                               + HIDDEN * 2 * INTER + INTER * HIDDEN)
                          + 4 * 2 * HIDDEN)
    io_bytes = (2 * 4 * bs * HIDDEN
                + 2 * 4 * bs * ROT_W + 2 * ROT_W * ROT_W
                + n_layers * 2 * bs * 2 * KV_W)
    return pl.CostEstimate(flops=flops, transcendentals=transcendentals,
                           bytes_accessed=w_bytes + io_bytes)


# ---------------------------------- Decoder.forward -------------------------------------
def decoder_forward(hidden_states, position_embeddings, params):
    """Decoder.forward (prefill): layer-pipelined pallas_call over the decoder stack."""
    B, S, D = hidden_states.shape
    n_layers = len(params)
    cos, sin = position_embeddings
    packed = pack_params(params)
    cos_t, sin_t = build_rope_tables(cos, sin, B)
    rot = build_rotate_half_matrix()
    x2d = hidden_states.reshape(B * S, D).astype(jnp.float32)
    BS = B * S

    kernel = functools.partial(decoder_layer_kernel, batch=B, seq=S)

    out2d, kv = pl.pallas_call(
        kernel,
        grid=(n_layers,),
        in_specs=[
            pl.BlockSpec((BS, D), lambda l: (0, 0)),                 # x (loaded once)
            pl.BlockSpec((BS, ROT_W), lambda l: (0, 0)),             # cos table
            pl.BlockSpec((BS, ROT_W), lambda l: (0, 0)),             # sin table
            pl.BlockSpec((ROT_W, ROT_W), lambda l: (0, 0)),          # rotate_half matrix
            pl.BlockSpec((1, 1, D), lambda l: (l, 0, 0)),            # ln1[l]
            pl.BlockSpec((1, D, QKV_W), lambda l: (l, 0, 0)),        # wqkv[l]
            pl.BlockSpec((1, Q_W, D), lambda l: (l, 0, 0)),          # wo[l]
            pl.BlockSpec((1, 1, D), lambda l: (l, 0, 0)),            # ln2[l]
            pl.BlockSpec((1, D, 2 * INTER), lambda l: (l, 0, 0)),    # wgu[l]
            pl.BlockSpec((1, INTER, D), lambda l: (l, 0, 0)),        # wd[l]
        ],
        out_specs=(
            pl.BlockSpec((BS, D), lambda l: (0, 0)),                 # resident hidden carry
            pl.BlockSpec((1, BS, 2 * KV_W), lambda l: (l, 0, 0)),    # per-layer [K|V] slab
        ),
        out_shape=(
            jax.ShapeDtypeStruct((BS, D), jnp.float32),
            jax.ShapeDtypeStruct((n_layers, BS, 2 * KV_W), jnp.bfloat16),
        ),
        compiler_params=pltpu.CompilerParams(
            dimension_semantics=("arbitrary",),
            vmem_limit_bytes=32 * 1024 * 1024),
        cost_estimate=_cost_estimate(n_layers, B, S),
    )(x2d, cos_t, sin_t, rot,
      packed["ln1"], packed["wqkv"], packed["wo"],
      packed["ln2"], packed["wgu"], packed["wd"])

    last_hidden = out2d.reshape(B, S, D)
    # layout plumbing (outside the kernel): (L, B*S, [K|V]) -> (L, B, KVH, S, hd), bf16
    k_all = kv[:, :, :KV_W].reshape(n_layers, B, S, N_KV_HEADS, HEAD_DIM
                                    ).transpose(0, 1, 3, 2, 4)
    v_all = kv[:, :, KV_W:].reshape(n_layers, B, S, N_KV_HEADS, HEAD_DIM
                                    ).transpose(0, 1, 3, 2, 4)
    past_key_values = tuple((k_all[l], v_all[l]) for l in range(n_layers))
    return last_hidden, past_key_values


# --------------------------------- pure-JAX reference -----------------------------------
def decoder_reference(hidden_states, position_embeddings, params):
    B, S, _ = hidden_states.shape
    cos, sin = position_embeddings
    half = HEAD_DIM // 2
    x = hidden_states.astype(jnp.float32)
    caches = []

    def rope(t):
        rot = jnp.concatenate([-t[..., half:], t[..., :half]], axis=-1)
        return t * cos[None, None] + rot * sin[None, None]

    for p in params:
        h = x * jax.lax.rsqrt(jnp.mean(x * x, -1, keepdims=True) + EPS) * p["ln1"]
        q = (h @ p["wq"]).reshape(B, S, N_HEADS, HEAD_DIM).transpose(0, 2, 1, 3)
        k = (h @ p["wk"]).reshape(B, S, N_KV_HEADS, HEAD_DIM).transpose(0, 2, 1, 3)
        v = (h @ p["wv"]).reshape(B, S, N_KV_HEADS, HEAD_DIM).transpose(0, 2, 1, 3)
        q, k = rope(q), rope(k)
        caches.append((k, v))
        kr = jnp.repeat(k, GROUP, axis=1)
        vr = jnp.repeat(v, GROUP, axis=1)
        s = jnp.einsum('bhqd,bhkd->bhqk', q, kr) / (HEAD_DIM ** 0.5)
        mask = jnp.tril(jnp.ones((S, S), bool))
        s = jnp.where(mask, s, -jnp.inf)
        pr = jax.nn.softmax(s, axis=-1)
        o = jnp.einsum('bhqk,bhkd->bhqd', pr, vr)
        o = o.transpose(0, 2, 1, 3).reshape(B, S, N_HEADS * HEAD_DIM)
        x = x + o @ p["wo"]
        h2 = x * jax.lax.rsqrt(jnp.mean(x * x, -1, keepdims=True) + EPS) * p["ln2"]
        g = h2 @ p["wg"]
        u = h2 @ p["wu"]
        x = x + (g * jax.nn.sigmoid(g) * u) @ p["wd"]
    return x, caches


# ------------------------------------- test setup ---------------------------------------
def make_rope(seq_len, head_dim, base=ROPE_BASE):
    inv_freq = 1.0 / (base ** (jnp.arange(0, head_dim, 2, dtype=jnp.float32) / head_dim))
    pos = jnp.arange(seq_len, dtype=jnp.float32)
    freqs = pos[:, None] * inv_freq[None, :]            # (S, hd/2)
    emb = jnp.concatenate([freqs, freqs], axis=-1)      # (S, hd)
    return jnp.cos(emb), jnp.sin(emb)


def init_params(key, n_layers):
    params = []
    scale = 0.05
    for _ in range(n_layers):
        key, *ks = jax.random.split(key, 8)
        params.append(dict(
            ln1=jnp.ones((1, HIDDEN), jnp.float32),
            ln2=jnp.ones((1, HIDDEN), jnp.float32),
            wq=scale * jax.random.normal(ks[0], (HIDDEN, N_HEADS * HEAD_DIM), jnp.float32),
            wk=scale * jax.random.normal(ks[1], (HIDDEN, N_KV_HEADS * HEAD_DIM), jnp.float32),
            wv=scale * jax.random.normal(ks[2], (HIDDEN, N_KV_HEADS * HEAD_DIM), jnp.float32),
            wo=scale * jax.random.normal(ks[3], (N_HEADS * HEAD_DIM, HIDDEN), jnp.float32),
            wg=scale * jax.random.normal(ks[4], (HIDDEN, INTER), jnp.float32),
            wu=scale * jax.random.normal(ks[5], (HIDDEN, INTER), jnp.float32),
            wd=scale * jax.random.normal(ks[6], (INTER, HIDDEN), jnp.float32),
        ))
    return params


if __name__ == "__main__":
    key = jax.random.PRNGKey(0)
    k_x, k_p = jax.random.split(key)

    hidden_states = jax.random.normal(k_x, (BATCH, SEQ, HIDDEN), jnp.float32)
    position_embeddings = make_rope(SEQ, HEAD_DIM)
    params = init_params(k_p, N_LAYERS)

    fwd = jax.jit(decoder_forward)
    last_hidden_state, past_key_values = fwd(hidden_states, position_embeddings, params)

    jax.block_until_ready(last_hidden_state)
    jax.block_until_ready(past_key_values)

    # correctness check against a pure-JAX f32 reference (bf16 matmuls + approx
    # reciprocal in the kernel -> loose tolerance)
    ref_hidden, ref_caches = decoder_reference(hidden_states, position_embeddings, params)
    h_err = float(jnp.max(jnp.abs(last_hidden_state - ref_hidden)))
    k_err = float(jnp.max(jnp.abs(past_key_values[-1][0].astype(jnp.float32)
                                  - ref_caches[-1][0])))
    v_err = float(jnp.max(jnp.abs(past_key_values[-1][1].astype(jnp.float32)
                                  - ref_caches[-1][1])))
    assert h_err < 5e-2, f"hidden mismatch: max abs err {h_err}"
    assert k_err < 5e-2 and v_err < 5e-2, f"kv mismatch: {k_err} / {v_err}"

    assert last_hidden_state.shape == (BATCH, SEQ, HIDDEN)
    assert len(past_key_values) == N_LAYERS
    assert past_key_values[0][0].shape == (BATCH, N_KV_HEADS, SEQ, HEAD_DIM)
    print("KERNEL_OK")
</pallas_src>

<mosaic_0001>
module attributes {stable_mosaic.version = 11 : i64} {
  func.func @decoder_layer_kernel(%arg0: i32, %arg1: memref<16x32xf32, #tpu.memory_space<vmem>>, %arg2: memref<16x48xf32, #tpu.memory_space<vmem>>, %arg3: memref<16x48xf32, #tpu.memory_space<vmem>>, %arg4: memref<48x48xbf16, #tpu.memory_space<vmem>>, %arg5: memref<1x1x32xf32, #tpu.memory_space<vmem>>, %arg6: memref<1x32x64xbf16, #tpu.memory_space<vmem>>, %arg7: memref<1x32x32xbf16, #tpu.memory_space<vmem>>, %arg8: memref<1x1x32xf32, #tpu.memory_space<vmem>>, %arg9: memref<1x32x128xbf16, #tpu.memory_space<vmem>>, %arg10: memref<1x64x32xbf16, #tpu.memory_space<vmem>>, %arg11: memref<16x32xf32, #tpu.memory_space<vmem>>, %arg12: memref<1x16x32xbf16, #tpu.memory_space<vmem>>) attributes {dimension_semantics = [#tpu.dimension_semantics<arbitrary>], iteration_bounds = array<i64: 2>, scalar_prefetch = 0 : i64, scratch_operands = 0 : i64, tpu.core_type = #tpu.core_type<tc>, window_params = [{pipeline_mode = #tpu.pipeline_mode<synchronous>, transform_indices = @transform_0, window_bounds = array<i64: 16, 32>}, {pipeline_mode = #tpu.pipeline_mode<synchronous>, transform_indices = @transform_1, window_bounds = array<i64: 16, 48>}, {pipeline_mode = #tpu.pipeline_mode<synchronous>, transform_indices = @transform_2, window_bounds = array<i64: 16, 48>}, {pipeline_mode = #tpu.pipeline_mode<synchronous>, transform_indices = @transform_3, window_bounds = array<i64: 48, 48>}, {transform_indices = @transform_4, window_bounds = array<i64: 1, 1, 32>}, {transform_indices = @transform_5, window_bounds = array<i64: 1, 32, 64>}, {transform_indices = @transform_6, window_bounds = array<i64: 1, 32, 32>}, {transform_indices = @transform_7, window_bounds = array<i64: 1, 1, 32>}, {transform_indices = @transform_8, window_bounds = array<i64: 1, 32, 128>}, {transform_indices = @transform_9, window_bounds = array<i64: 1, 64, 32>}, {pipeline_mode = #tpu.pipeline_mode<synchronous>, transform_indices = @transform_10, window_bounds = array<i64: 16, 32>}, {transform_indices = @transform_11, window_bounds = array<i64: 1, 16, 32>}]} {
    %c0_i32 = arith.constant 0 : i32
    %0 = arith.cmpi eq, %arg0, %c0_i32 : i32
    %1 = arith.extui %0 : i1 to i32
    %c0_i32_0 = arith.constant 0 : i32
    %2 = arith.cmpi ne, %1, %c0_i32_0 : i32
    scf.if %2 {
      %c0_53 = arith.constant 0 : index
      %c0_54 = arith.constant 0 : index
      %145 = vector.load %arg1[%c0_53, %c0_54] : memref<16x32xf32, #tpu.memory_space<vmem>>, vector<16x32xf32>
      %c0_55 = arith.constant 0 : index
      %c0_56 = arith.constant 0 : index
      %146 = vector.load %arg11[%c0_55, %c0_56] : memref<16x32xf32, #tpu.memory_space<vmem>>, vector<16x32xf32>
      tpu.vector_store %arg11[%c0_55, %c0_56], %145 {strides = array<i32>} : memref<16x32xf32, #tpu.memory_space<vmem>>, vector<16x32xf32>,
    } else {
    }
    %c0 = arith.constant 0 : index
    %c0_1 = arith.constant 0 : index
    %3 = vector.load %arg11[%c0, %c0_1] : memref<16x32xf32, #tpu.memory_space<vmem>>, vector<16x32xf32>
    %4 = tpu.iota {dimensions = array<i32: 1>} : vector<1x8x8xi32>
    %5 = tpu.iota {dimensions = array<i32: 2>} : vector<1x8x8xi32>
    %6 = arith.cmpi sge, %4, %5 : vector<1x8x8xi32>
    %c0_2 = arith.constant 0 : index
    %c0_3 = arith.constant 0 : index
    %c0_4 = arith.constant 0 : index
    %7 = vector.load %arg5[%c0_2, %c0_3, %c0_4] : memref<1x1x32xf32, #tpu.memory_space<vmem>>, vector<1x1x32xf32>
    %8 = vector.shape_cast %7 : vector<1x1x32xf32> to vector<1x32xf32>
    %9 = arith.mulf %3, %3 : vector<16x32xf32>
    %cst = arith.constant dense<0.000000e+00> : vector<16xf32>
    %10 = vector.multi_reduction <add>, %9, %cst [1] : vector<16x32xf32> to vector<16xf32>
    %11 = vector.shape_cast %10 : vector<16xf32> to vector<16x1xf32>
    %cst_5 = arith.constant 3.200000e+01 : f32
    %12 = vector.broadcast %cst_5 : f32 to vector<16x1xf32>
    %13 = arith.divf %11, %12 : vector<16x1xf32>
    %cst_6 = arith.constant 9.99999997E-7 : f32
    %14 = vector.broadcast %cst_6 : f32 to vector<16x1xf32>
    %15 = arith.addf %13, %14 : vector<16x1xf32>
    %16 = math.rsqrt %15 : vector<16x1xf32>
    %17 = vector.broadcast %16 : vector<16x1xf32> to vector<16x32xf32>
    %18 = arith.mulf %3, %17 : vector<16x32xf32>
    %19 = vector.broadcast %8 : vector<1x32xf32> to vector<16x32xf32>
    %20 = arith.mulf %18, %19 : vector<16x32xf32>
    %21 = arith.truncf %20 : vector<16x32xf32> to vector<16x32xbf16>
    %c0_7 = arith.constant 0 : index
    %c0_8 = arith.constant 0 : index
    %c0_9 = arith.constant 0 : index
    %22 = vector.load %arg6[%c0_7, %c0_8, %c0_9] : memref<1x32x64xbf16, #tpu.memory_space<vmem>>, vector<1x32x64xbf16>
    %23 = vector.shape_cast %22 : vector<1x32x64xbf16> to vector<32x64xbf16>
    %cst_10 = arith.constant dense<0.000000e+00> : vector<16x64xf32>
    %24 = tpu.matmul %21, %23, %cst_10 {dimension_numbers = #tpu.dot_dimension_numbers<[1], [0], [0], [1], [0, 0, 1, 1], [], []>} : vector<16x32xbf16>, vector<32x64xbf16>, vector<16x64xf32> -> vector<16x64xf32>
    %25 = vector.extract_strided_slice %24 {offsets = [0, 0], sizes = [16, 48], strides = [1, 1]} : vector<16x64xf32> to vector<16x48xf32>
    %26 = vector.extract_strided_slice %24 {offsets = [0, 48], sizes = [16, 16], strides = [1, 1]} : vector<16x64xf32> to vector<16x16xf32>
    %27 = arith.truncf %25 : vector<16x48xf32> to vector<16x48xbf16>
    %c0_11 = arith.constant 0 : index
    %c0_12 = arith.constant 0 : index
    %28 = vector.load %arg4[%c0_11, %c0_12] : memref<48x48xbf16, #tpu.memory_space<vmem>>, vector<48x48xbf16>
    %cst_13 = arith.constant dense<0.000000e+00> : vector<16x48xf32>
    %29 = tpu.matmul %27, %28, %cst_13 {dimension_numbers = #tpu.dot_dimension_numbers<[1], [0], [0], [1], [0, 0, 1, 1], [], []>} : vector<16x48xbf16>, vector<48x48xbf16>, vector<16x48xf32> -> vector<16x48xf32>
    %c0_14 = arith.constant 0 : index
    %c0_15 = arith.constant 0 : index
    %30 = vector.load %arg2[%c0_14, %c0_15] : memref<16x48xf32, #tpu.memory_space<vmem>>, vector<16x48xf32>
    %31 = arith.mulf %25, %30 : vector<16x48xf32>
    %c0_16 = arith.constant 0 : index
    %c0_17 = arith.constant 0 : index
    %32 = vector.load %arg3[%c0_16, %c0_17] : memref<16x48xf32, #tpu.memory_space<vmem>>, vector<16x48xf32>
    %33 = arith.mulf %29, %32 : vector<16x48xf32>
    %34 = arith.addf %31, %33 : vector<16x48xf32>
    %35 = vector.extract_strided_slice %34 {offsets = [0, 0], sizes = [16, 32], strides = [1, 1]} : vector<16x48xf32> to vector<16x32xf32>
    %36 = vector.extract_strided_slice %34 {offsets = [0, 32], sizes = [16, 16], strides = [1, 1]} : vector<16x48xf32> to vector<16x16xf32>
    %37 = arith.truncf %36 : vector<16x16xf32> to vector<16x16xbf16>
    %c0_18 = arith.constant 0 : index
    %c0_19 = arith.constant 0 : index
    %c0_20 = arith.constant 0 : index
    %38 = vector.load %arg12[%c0_18, %c0_19, %c0_20] : memref<1x16x32xbf16, #tpu.memory_space<vmem>>, vector<1x16x16xbf16>
    %39 = vector.shape_cast %38 : vector<1x16x16xbf16> to vector<16x16xbf16>
    %40 = vector.shape_cast %37 : vector<16x16xbf16> to vector<1x16x16xbf16>
    tpu.vector_store %arg12[%c0_18, %c0_19, %c0_20], %40 {strides = array<i32>} : memref<1x16x32xbf16, #tpu.memory_space<vmem>>, vector<1x16x16xbf16>,
    %41 = arith.truncf %26 : vector<16x16xf32> to vector<16x16xbf16>
    %c0_21 = arith.constant 0 : index
    %c0_22 = arith.constant 0 : index
    %c16 = arith.constant 16 : index
    %42 = vector.load %arg12[%c0_21, %c0_22, %c16] : memref<1x16x32xbf16, #tpu.memory_space<vmem>>, vector<1x16x16xbf16>
    %43 = vector.shape_cast %42 : vector<1x16x16xbf16> to vector<16x16xbf16>
    %44 = vector.shape_cast %41 : vector<16x16xbf16> to vector<1x16x16xbf16>
    tpu.vector_store %arg12[%c0_21, %c0_22, %c16], %44 {strides = array<i32>} : memref<1x16x32xbf16, #tpu.memory_space<vmem>>, vector<1x16x16xbf16>,
    %45 = vector.extract_strided_slice %35 {offsets = [0, 0], sizes = [16, 8], strides = [1, 1]} : vector<16x32xf32> to vector<16x8xf32>
    %46 = vector.shape_cast %45 : vector<16x8xf32> to vector<2x8x8xf32>
    %47 = vector.extract_strided_slice %35 {offsets = [0, 8], sizes = [16, 8], strides = [1, 1]} : vector<16x32xf32> to vector<16x8xf32>
    %48 = vector.shape_cast %47 : vector<16x8xf32> to vector<2x8x8xf32>
    %49 = vector.extract_strided_slice %35 {offsets = [0, 16], sizes = [16, 8], strides = [1, 1]} : vector<16x32xf32> to vector<16x8xf32>
    %50 = vector.shape_cast %49 : vector<16x8xf32> to vector<2x8x8xf32>
    %51 = vector.extract_strided_slice %35 {offsets = [0, 24], sizes = [16, 8], strides = [1, 1]} : vector<16x32xf32> to vector<16x8xf32>
    %52 = vector.shape_cast %51 : vector<16x8xf32> to vector<2x8x8xf32>
    %53 = vector.extract_strided_slice %36 {offsets = [0, 0], sizes = [16, 8], strides = [1, 1]} : vector<16x16xf32> to vector<16x8xf32>
    %54 = vector.shape_cast %53 : vector<16x8xf32> to vector<2x8x8xf32>
    %55 = vector.extract_strided_slice %36 {offsets = [0, 8], sizes = [16, 8], strides = [1, 1]} : vector<16x16xf32> to vector<16x8xf32>
    %56 = vector.shape_cast %55 : vector<16x8xf32> to vector<2x8x8xf32>
    %57 = vector.extract_strided_slice %26 {offsets = [0, 0], sizes = [16, 8], strides = [1, 1]} : vector<16x16xf32> to vector<16x8xf32>
    %58 = vector.shape_cast %57 : vector<16x8xf32> to vector<2x8x8xf32>
    %59 = vector.extract_strided_slice %26 {offsets = [0, 8], sizes = [16, 8], strides = [1, 1]} : vector<16x16xf32> to vector<16x8xf32>
    %60 = vector.shape_cast %59 : vector<16x8xf32> to vector<2x8x8xf32>
    %61 = tpu.concatenate %46, %48, %50, %52 in 0 : vector<2x8x8xf32>, vector<2x8x8xf32>, vector<2x8x8xf32>, vector<2x8x8xf32> -> vector<8x8x8xf32>
    %62 = arith.truncf %61 : vector<8x8x8xf32> to vector<8x8x8xbf16>
    %63 = tpu.concatenate %54, %54, %56, %56 in 0 : vector<2x8x8xf32>, vector<2x8x8xf32>, vector<2x8x8xf32>, vector<2x8x8xf32> -> vector<8x8x8xf32>
    %64 = arith.truncf %63 : vector<8x8x8xf32> to vector<8x8x8xbf16>
    %65 = tpu.concatenate %58, %58, %60, %60 in 0 : vector<2x8x8xf32>, vector<2x8x8xf32>, vector<2x8x8xf32>, vector<2x8x8xf32> -> vector<8x8x8xf32>
    %66 = arith.truncf %65 : vector<8x8x8xf32> to vector<8x8x8xbf16>
    "tpu.trace_start"() <{level = 10 : i32, message = "nqd,nkd->nqk"}> : () -> ()
    %cst_23 = arith.constant dense<0.000000e+00> : vector<8x8x8xf32>
    %67 = tpu.matmul %62, %64, %cst_23 {dimension_numbers = #tpu.dot_dimension_numbers<[2], [2], [1], [1], [0, 0, 0, 1, 1, 1], [0], [0]>} : vector<8x8x8xbf16>, vector<8x8x8xbf16>, vector<8x8x8xf32> -> vector<8x8x8xf32>
    %cst_24 = arith.constant -1.000000e+30 : f32
    "tpu.trace_stop"() : () -> ()
    %68 = vector.shape_cast %6 : vector<1x8x8xi1> to vector<1x8x8xi1>
    %69 = vector.broadcast %68 : vector<1x8x8xi1> to vector<8x8x8xi1>
    %70 = vector.broadcast %cst_24 : f32 to vector<8x8x8xf32>
    %71 = arith.select %69, %67, %70 : vector<8x8x8xi1>, vector<8x8x8xf32>
    %cst_25 = arith.constant dense<0xFF800000> : vector<8x8xf32>
    %72 = vector.multi_reduction <maximumf>, %71, %cst_25 [2] : vector<8x8x8xf32> to vector<8x8xf32>
    %73 = vector.shape_cast %72 : vector<8x8xf32> to vector<8x8x1xf32>
    %74 = vector.broadcast %73 : vector<8x8x1xf32> to vector<8x8x8xf32>
    %75 = arith.subf %71, %74 : vector<8x8x8xf32>
    %76 = math.exp %75 : vector<8x8x8xf32>
    %cst_26 = arith.constant dense<0.000000e+00> : vector<8x8xf32>
    %77 = vector.multi_reduction <add>, %76, %cst_26 [2] : vector<8x8x8xf32> to vector<8x8xf32>
    %78 = vector.shape_cast %77 : vector<8x8xf32> to vector<8x8x1xf32>
    %79 = tpu.reciprocal %78 {approx = true} : vector<8x8x1xf32> -> vector<8x8x1xf32>
    %80 = vector.broadcast %79 : vector<8x8x1xf32> to vector<8x8x8xf32>
    %81 = arith.mulf %76, %80 : vector<8x8x8xf32>
    %82 = arith.truncf %81 : vector<8x8x8xf32> to vector<8x8x8xbf16>
    "tpu.trace_start"() <{level = 10 : i32, message = "nqk,nkd->nqd"}> : () -> ()
    %cst_27 = arith.constant dense<0.000000e+00> : vector<8x8x8xf32>
    %83 = tpu.matmul %82, %66, %cst_27 {dimension_numbers = #tpu.dot_dimension_numbers<[2], [1], [1], [2], [0, 0, 0, 1, 1, 2], [0], [0]>} : vector<8x8x8xbf16>, vector<8x8x8xbf16>, vector<8x8x8xf32> -> vector<8x8x8xf32>
    "tpu.trace_stop"() : () -> ()
    %c0_28 = arith.constant 0 : index
    %c0_29 = arith.constant 0 : index
    %c0_30 = arith.constant 0 : index
    %84 = vector.load %arg7[%c0_28, %c0_29, %c0_30] : memref<1x32x32xbf16, #tpu.memory_space<vmem>>, vector<1x32x32xbf16>
    %85 = vector.shape_cast %84 : vector<1x32x32xbf16> to vector<32x32xbf16>
    %cst_31 = arith.constant 0.000000e+00 : f32
    %86 = vector.broadcast %cst_31 : f32 to vector<16x32xf32>
    %87 = vector.extract_strided_slice %83 {offsets = [0, 0, 0], sizes = [2, 8, 8], strides = [1, 1, 1]} : vector<8x8x8xf32> to vector<2x8x8xf32>
    %88 = vector.shape_cast %87 : vector<2x8x8xf32> to vector<16x8xf32>
    %89 = arith.truncf %88 : vector<16x8xf32> to vector<16x8xbf16>
    %90 = vector.extract_strided_slice %85 {offsets = [0, 0], sizes = [8, 32], strides = [1, 1]} : vector<32x32xbf16> to vector<8x32xbf16>
    %cst_32 = arith.constant dense<0.000000e+00> : vector<16x32xf32>
    %91 = tpu.matmul %89, %90, %cst_32 {dimension_numbers = #tpu.dot_dimension_numbers<[1], [0], [0], [1], [0, 0, 1, 1], [], []>} : vector<16x8xbf16>, vector<8x32xbf16>, vector<16x32xf32> -> vector<16x32xf32>
    %92 = arith.addf %86, %91 : vector<16x32xf32>
    %93 = vector.extract_strided_slice %83 {offsets = [2, 0, 0], sizes = [2, 8, 8], strides = [1, 1, 1]} : vector<8x8x8xf32> to vector<2x8x8xf32>
    %94 = vector.shape_cast %93 : vector<2x8x8xf32> to vector<16x8xf32>
    %95 = arith.truncf %94 : vector<16x8xf32> to vector<16x8xbf16>
    %96 = vector.extract_strided_slice %85 {offsets = [8, 0], sizes = [8, 32], strides = [1, 1]} : vector<32x32xbf16> to vector<8x32xbf16>
    %cst_33 = arith.constant dense<0.000000e+00> : vector<16x32xf32>
    %97 = tpu.matmul %95, %96, %cst_33 {dimension_numbers = #tpu.dot_dimension_numbers<[1], [0], [0], [1], [0, 0, 1, 1], [], []>} : vector<16x8xbf16>, vector<8x32xbf16>, vector<16x32xf32> -> vector<16x32xf32>
    %98 = arith.addf %92, %97 : vector<16x32xf32>
    %99 = vector.extract_strided_slice %83 {offsets = [4, 0, 0], sizes = [2, 8, 8], strides = [1, 1, 1]} : vector<8x8x8xf32> to vector<2x8x8xf32>
    %100 = vector.shape_cast %99 : vector<2x8x8xf32> to vector<16x8xf32>
    %101 = arith.truncf %100 : vector<16x8xf32> to vector<16x8xbf16>
    %102 = vector.extract_strided_slice %85 {offsets = [16, 0], sizes = [8, 32], strides = [1, 1]} : vector<32x32xbf16> to vector<8x32xbf16>
    %cst_34 = arith.constant dense<0.000000e+00> : vector<16x32xf32>
    %103 = tpu.matmul %101, %102, %cst_34 {dimension_numbers = #tpu.dot_dimension_numbers<[1], [0], [0], [1], [0, 0, 1, 1], [], []>} : vector<16x8xbf16>, vector<8x32xbf16>, vector<16x32xf32> -> vector<16x32xf32>
    %104 = arith.addf %98, %103 : vector<16x32xf32>
    %105 = vector.extract_strided_slice %83 {offsets = [6, 0, 0], sizes = [2, 8, 8], strides = [1, 1, 1]} : vector<8x8x8xf32> to vector<2x8x8xf32>
    %106 = vector.shape_cast %105 : vector<2x8x8xf32> to vector<16x8xf32>
    %107 = arith.truncf %106 : vector<16x8xf32> to vector<16x8xbf16>
    %108 = vector.extract_strided_slice %85 {offsets = [24, 0], sizes = [8, 32], strides = [1, 1]} : vector<32x32xbf16> to vector<8x32xbf16>
    %cst_35 = arith.constant dense<0.000000e+00> : vector<16x32xf32>
    %109 = tpu.matmul %107, %108, %cst_35 {dimension_numbers = #tpu.dot_dimension_numbers<[1], [0], [0], [1], [0, 0, 1, 1], [], []>} : vector<16x8xbf16>, vector<8x32xbf16>, vector<16x32xf32> -> vector<16x32xf32>
    %110 = arith.addf %104, %109 : vector<16x32xf32>
    %111 = arith.addf %3, %110 : vector<16x32xf32>
    %c0_36 = arith.constant 0 : index
    %c0_37 = arith.constant 0 : index
    %c0_38 = arith.constant 0 : index
    %112 = vector.load %arg8[%c0_36, %c0_37, %c0_38] : memref<1x1x32xf32, #tpu.memory_space<vmem>>, vector<1x1x32xf32>
    %113 = vector.shape_cast %112 : vector<1x1x32xf32> to vector<1x32xf32>
    %114 = arith.mulf %111, %111 : vector<16x32xf32>
    %cst_39 = arith.constant dense<0.000000e+00> : vector<16xf32>
    %115 = vector.multi_reduction <add>, %114, %cst_39 [1] : vector<16x32xf32> to vector<16xf32>
    %116 = vector.shape_cast %115 : vector<16xf32> to vector<16x1xf32>
    %cst_40 = arith.constant 3.200000e+01 : f32
    %117 = vector.broadcast %cst_40 : f32 to vector<16x1xf32>
    %118 = arith.divf %116, %117 : vector<16x1xf32>
    %cst_41 = arith.constant 9.99999997E-7 : f32
    %119 = vector.broadcast %cst_41 : f32 to vector<16x1xf32>
    %120 = arith.addf %118, %119 : vector<16x1xf32>
    %121 = math.rsqrt %120 : vector<16x1xf32>
    %122 = vector.broadcast %121 : vector<16x1xf32> to vector<16x32xf32>
    %123 = arith.mulf %111, %122 : vector<16x32xf32>
    %124 = vector.broadcast %113 : vector<1x32xf32> to vector<16x32xf32>
    %125 = arith.mulf %123, %124 : vector<16x32xf32>
    %126 = arith.truncf %125 : vector<16x32xf32> to vector<16x32xbf16>
    %c0_42 = arith.constant 0 : index
    %c0_43 = arith.constant 0 : index
    %c0_44 = arith.constant 0 : index
    %127 = vector.load %arg9[%c0_42, %c0_43, %c0_44] : memref<1x32x128xbf16, #tpu.memory_space<vmem>>, vector<1x32x128xbf16>
    %128 = vector.shape_cast %127 : vector<1x32x128xbf16> to vector<32x128xbf16>
    %cst_45 = arith.constant dense<0.000000e+00> : vector<16x128xf32>
    %129 = tpu.matmul %126, %128, %cst_45 {dimension_numbers = #tpu.dot_dimension_numbers<[1], [0], [0], [1], [0, 0, 1, 1], [], []>} : vector<16x32xbf16>, vector<32x128xbf16>, vector<16x128xf32> -> vector<16x128xf32>
    %130 = vector.extract_strided_slice %129 {offsets = [0, 0], sizes = [16, 64], strides = [1, 1]} : vector<16x128xf32> to vector<16x64xf32>
    %131 = vector.extract_strided_slice %129 {offsets = [0, 64], sizes = [16, 64], strides = [1, 1]} : vector<16x128xf32> to vector<16x64xf32>
    %132 = arith.negf %130 : vector<16x64xf32>
    %133 = math.exp %132 : vector<16x64xf32>
    %cst_46 = arith.constant 1.000000e+00 : f32
    %134 = vector.broadcast %cst_46 : f32 to vector<16x64xf32>
    %135 = arith.addf %134, %133 : vector<16x64xf32>
    %136 = arith.divf %134, %135 : vector<16x64xf32>
    %137 = arith.mulf %130, %136 : vector<16x64xf32>
    %138 = arith.mulf %137, %131 : vector<16x64xf32>
    %139 = arith.truncf %138 : vector<16x64xf32> to vector<16x64xbf16>
    %c0_47 = arith.constant 0 : index
    %c0_48 = arith.constant 0 : index
    %c0_49 = arith.constant 0 : index
    %140 = vector.load %arg10[%c0_47, %c0_48, %c0_49] : memref<1x64x32xbf16, #tpu.memory_space<vmem>>, vector<1x64x32xbf16>
    %141 = vector.shape_cast %140 : vector<1x64x32xbf16> to vector<64x32xbf16>
    %cst_50 = arith.constant dense<0.000000e+00> : vector<16x32xf32>
    %142 = tpu.matmul %139, %141, %cst_50 {dimension_numbers = #tpu.dot_dimension_numbers<[1], [0], [0], [1], [0, 0, 1, 1], [], []>} : vector<16x64xbf16>, vector<64x32xbf16>, vector<16x32xf32> -> vector<16x32xf32>
    %143 = arith.addf %111, %142 : vector<16x32xf32>
    %c0_51 = arith.constant 0 : index
    %c0_52 = arith.constant 0 : index
    %144 = vector.load %arg11[%c0_51, %c0_52] : memref<16x32xf32, #tpu.memory_space<vmem>>, vector<16x32xf32>
    tpu.vector_store %arg11[%c0_51, %c0_52], %143 {strides = array<i32>} : memref<16x32xf32, #tpu.memory_space<vmem>>, vector<16x32xf32>,
    return
  }
  func.func @transform_0(%arg0: i32) -> (i32, i32) {
    %c0_i32 = arith.constant 0 : i32
    %c0_i32_0 = arith.constant 0 : i32
    %c0_i32_1 = arith.constant 0 : i32
    return %c0_i32, %c0_i32_0 : i32, i32
  }
  func.func @transform_1(%arg0: i32) -> (i32, i32) {
    %c0_i32 = arith.constant 0 : i32
    %c0_i32_0 = arith.constant 0 : i32
    %c0_i32_1 = arith.constant 0 : i32
    return %c0_i32, %c0_i32_0 : i32, i32
  }
  func.func @transform_2(%arg0: i32) -> (i32, i32) {
    %c0_i32 = arith.constant 0 : i32
    %c0_i32_0 = arith.constant 0 : i32
    %c0_i32_1 = arith.constant 0 : i32
    return %c0_i32, %c0_i32_0 : i32, i32
  }
  func.func @transform_3(%arg0: i32) -> (i32, i32) {
    %c0_i32 = arith.constant 0 : i32
    %c0_i32_0 = arith.constant 0 : i32
    %c0_i32_1 = arith.constant 0 : i32
    return %c0_i32, %c0_i32_0 : i32, i32
  }
  func.func @transform_4(%arg0: i32) -> (i32, i32, i32) {
    %c0_i32 = arith.constant 0 : i32
    %c0_i32_0 = arith.constant 0 : i32
    %c0_i32_1 = arith.constant 0 : i32
    return %arg0, %c0_i32, %c0_i32_0 : i32, i32, i32
  }
  func.func @transform_5(%arg0: i32) -> (i32, i32, i32) {
    %c0_i32 = arith.constant 0 : i32
    %c0_i32_0 = arith.constant 0 : i32
    %c0_i32_1 = arith.constant 0 : i32
    return %arg0, %c0_i32, %c0_i32_0 : i32, i32, i32
  }
  func.func @transform_6(%arg0: i32) -> (i32, i32, i32) {
    %c0_i32 = arith.constant 0 : i32
    %c0_i32_0 = arith.constant 0 : i32
    %c0_i32_1 = arith.constant 0 : i32
    return %arg0, %c0_i32, %c0_i32_0 : i32, i32, i32
  }
  func.func @transform_7(%arg0: i32) -> (i32, i32, i32) {
    %c0_i32 = arith.constant 0 : i32
    %c0_i32_0 = arith.constant 0 : i32
    %c0_i32_1 = arith.constant 0 : i32
    return %arg0, %c0_i32, %c0_i32_0 : i32, i32, i32
  }
  func.func @transform_8(%arg0: i32) -> (i32, i32, i32) {
    %c0_i32 = arith.constant 0 : i32
    %c0_i32_0 = arith.constant 0 : i32
    %c0_i32_1 = arith.constant 0 : i32
    return %arg0, %c0_i32, %c0_i32_0 : i32, i32, i32
  }
  func.func @transform_9(%arg0: i32) -> (i32, i32, i32) {
    %c0_i32 = arith.constant 0 : i32
    %c0_i32_0 = arith.constant 0 : i32
    %c0_i32_1 = arith.constant 0 : i32
    return %arg0, %c0_i32, %c0_i32_0 : i32, i32, i32
  }
  func.func @transform_10(%arg0: i32) -> (i32, i32) {
    %c0_i32 = arith.constant 0 : i32
    %c0_i32_0 = arith.constant 0 : i32
    %c0_i32_1 = arith.constant 0 : i32
    return %c0_i32, %c0_i32_0 : i32, i32
  }
  func.func @transform_11(%arg0: i32) -> (i32, i32, i32) {
    %c0_i32 = arith.constant 0 : i32
    %c0_i32_0 = arith.constant 0 : i32
    %c0_i32_1 = arith.constant 0 : i32
    return %arg0, %c0_i32, %c0_i32_0 : i32, i32, i32
  }
}

</mosaic_0001>

<llo_original>
// kernel: decoder_forward.1
$region0: #{decoder_forward.1}
  #allocation0 [shape = 'u32[]', space=smem, size = 0x4, offset = 0x4, fixed_abs, tag = 'smem constant byte address 0x4 - core index']
  #allocation1 [shape = 'u32[144,128]{1,0:T(1,128)}', space=vmem, size = 0x12000, scoped, tag = 'internal scratch']
  %s0 = inlined_call_operand.vmem [shape: f32[16,32], index: 0, kind: input, shape index: {}]
  %s1 = inlined_call_operand.vmem [shape: f32[16,48], index: 1, kind: input, shape index: {}]
  %s2 = inlined_call_operand.vmem [shape: f32[16,48], index: 2, kind: input, shape index: {}]
  %s3 = inlined_call_operand.vmem [shape: bf16[48,48], index: 3, kind: input, shape index: {}]
  %s4 = inlined_call_operand.vmem [shape: f32[2,1,32], index: 4, kind: input, shape index: {}]
  %s5 = inlined_call_operand.vmem [shape: bf16[2,32,64], index: 5, kind: input, shape index: {}]
  %s6 = inlined_call_operand.vmem [shape: bf16[2,32,32], index: 6, kind: input, shape index: {}]
  %s7 = inlined_call_operand.vmem [shape: f32[2,1,32], index: 7, kind: input, shape index: {}]
  %s8 = inlined_call_operand.vmem [shape: bf16[2,32,128], index: 8, kind: input, shape index: {}]
  %s9 = inlined_call_operand.vmem [shape: bf16[2,64,32], index: 9, kind: input, shape index: {}]
  %s10 = inlined_call_operand.hbm [shape: f32[16,32], index: 10, kind: output, shape index: {0}]
  %s11 = inlined_call_operand.vmem [shape: bf16[2,16,32], index: 11, kind: output, shape index: {1}]
  %12 = xla_tuple %s10, %s11
  %s13 = sld [smem:[#allocation0]]
  $region85: #{decoder_forward.1} parent=0
    _
  %s15 = ssub.s32 1, %s13
  %s16 = scalar_select 0, %s15, %s13
  $region1: #{decoder_forward.1} parent=0
    #allocation2 [shape = 'u8[8192]{0}', space=vmem, size = 0x2000, scoped, tag = 'output window, operand 0, single buffered']
    #allocation3 [shape = 's32[2]{0}', space=sflag, size = 0x8, scoped, tag = 'scoped memory for decoder_forward.1']
    %17 = vsyncpa [#allocation3], 0
    loop: start=0, step=1, limit=4
    $region2: #{decoder_forward.1} parent=1 // loop_pre_header
      _
    $region3: #{decoder_forward.1} parent=1 // loop_header
      %s19 = sphi 0, %s23
      %p20 = scmp.ge.s32.totalorder %s19, 4
      %s27 = sphi 0, %s27
      %s29 = sphi 0, %s27
      %s30 = sphi 0, %s29
      %s44 = sphi 0, %s30
      %s48 = sphi 0, %s48
      %s50 = sphi 0, %s48
      %s51 = sphi 0, %s50
      %s65 = sphi 0, %s51
      %s69 = sphi 0, %s69
      %s71 = sphi 0, %s69
      %s72 = sphi 0, %s71
      %s86 = sphi 0, %s72
      %s90 = sphi 0, %s90
      %s92 = sphi 0, %s90
      %s93 = sphi 0, %s92
      %s107 = sphi 0, %s93
      %s113 = sphi 0, %s115
      %s116 = sphi 0, %s113
      %s117 = sphi 0, %s116
      %s133 = sphi 0, %s117
      %s139 = sphi 0, %s141
      %s142 = sphi 0, %s139
      %s143 = sphi 0, %s142
      %s159 = sphi 0, %s143
      %s165 = sphi 0, %s167
      %s168 = sphi 0, %s165
      %s169 = sphi 0, %s168
      %s185 = sphi 0, %s169
      %s191 = sphi 0, %s193
      %s194 = sphi 0, %s191
      %s195 = sphi 0, %s194
      %s211 = sphi 0, %s195
      %s217 = sphi 0, %s219
      %s220 = sphi 0, %s217
      %s221 = sphi 0, %s220
      %s237 = sphi 0, %s221
      %s243 = sphi 0, %s245
      %s246 = sphi 0, %s243
      %s247 = sphi 0, %s246
      %s263 = sphi 0, %s247
      %s267 = sphi 0, %s267
      %s269 = sphi 0, %s267
      %s270 = sphi 0, %s269
      %s284 = sphi 0, %s270
      %s290 = sphi 0, %s292
      %s293 = sphi 0, %s290
      %s294 = sphi 0, %s293
      %s310 = sphi 0, %s294
    $region4: #{decoder_forward.1} parent=1 // loop_header_branch
      %22 = sbr.rel (%p20) target = $region8
    $region5: #{decoder_forward.1} parent=1 // loop_body
      %s24 = ssub.s32 %s19, 1
      %s25 = ssub.s32 %s19, 2
      %s26 = sadd.s32 %s19, 1
      %s28 = sadd.s32 %s27, 1
      %p31 = scmp.eq.s32.totalorder %s19, 1
      %p32 = scmp.ne.s32.totalorder %s27, %s29
      %p33 = scmp.eq.s32.totalorder %s19, 0
      %p34 = por %p32, %p33
      %p35 = scmp.ne.s32.totalorder %s27, %s29
      %p36 = scmp.eq.s32.totalorder %s24, 1
      %p37 = por %p35, %p36
      %p38 = scmp.ne.s32.totalorder %s29, %s30
      %p39 = scmp.eq.s32.totalorder %s24, 0
      %p40 = por %p38, %p39
      %p41 = scmp.ne.s32.totalorder %s29, %s30
      %p42 = scmp.eq.s32.totalorder %s25, 1
      %p43 = por %p41, %p42
      %p45 = scmp.ne.s32.totalorder %s30, %s44
      %p46 = scmp.eq.s32.totalorder %s25, 0
      %p47 = por %p45, %p46
      %s49 = sadd.s32 %s48, 1
      %p52 = scmp.eq.s32.totalorder %s19, 1
      %p53 = scmp.ne.s32.totalorder %s48, %s50
      %p54 = scmp.eq.s32.totalorder %s19, 0
      %p55 = por %p53, %p54
      %p56 = scmp.ne.s32.totalorder %s48, %s50
      %p57 = scmp.eq.s32.totalorder %s24, 1
      %p58 = por %p56, %p57
      %p59 = scmp.ne.s32.totalorder %s50, %s51
      %p60 = scmp.eq.s32.totalorder %s24, 0
      %p61 = por %p59, %p60
      %p62 = scmp.ne.s32.totalorder %s50, %s51
      %p63 = scmp.eq.s32.totalorder %s25, 1
      %p64 = por %p62, %p63
      %p66 = scmp.ne.s32.totalorder %s51, %s65
      %p67 = scmp.eq.s32.totalorder %s25, 0
      %p68 = por %p66, %p67
      %s70 = sadd.s32 %s69, 1
      %p73 = scmp.eq.s32.totalorder %s19, 1
      %p74 = scmp.ne.s32.totalorder %s69, %s71
      %p75 = scmp.eq.s32.totalorder %s19, 0
      %p76 = por %p74, %p75
      %p77 = scmp.ne.s32.totalorder %s69, %s71
      %p78 = scmp.eq.s32.totalorder %s24, 1
      %p79 = por %p77, %p78
      %p80 = scmp.ne.s32.totalorder %s71, %s72
      %p81 = scmp.eq.s32.totalorder %s24, 0
      %p82 = por %p80, %p81
      %p83 = scmp.ne.s32.totalorder %s71, %s72
      %p84 = scmp.eq.s32.totalorder %s25, 1
      %p85 = por %p83, %p84
      %p87 = scmp.ne.s32.totalorder %s72, %s86
      %p88 = scmp.eq.s32.totalorder %s25, 0
      %p89 = por %p87, %p88
      %s91 = sadd.s32 %s90, 1
      %p94 = scmp.eq.s32.totalorder %s19, 1
      %p95 = scmp.ne.s32.totalorder %s90, %s92
      %p96 = scmp.eq.s32.totalorder %s19, 0
      %p97 = por %p95, %p96
      %p98 = scmp.ne.s32.totalorder %s90, %s92
      %p99 = scmp.eq.s32.totalorder %s24, 1
      %p100 = por %p98, %p99
      %p101 = scmp.ne.s32.totalorder %s92, %s93
      %p102 = scmp.eq.s32.totalorder %s24, 0
      %p103 = por %p101, %p102
      %p104 = scmp.ne.s32.totalorder %s92, %s93
      %p105 = scmp.eq.s32.totalorder %s25, 1
      %p106 = por %p104, %p105
      %p108 = scmp.ne.s32.totalorder %s93, %s107
      %p109 = scmp.eq.s32.totalorder %s25, 0
      %p110 = por %p108, %p109
      %s111 = ssub.s32 %s19, %s26
      %p112 = scmp.eq.s32.totalorder %s111, 0
      %s114 = sadd.s32 %s113, 1
      %s115 = scalar_select %p112, %s113, %s114
      %p118 = pneg %p112
      %p119 = scmp.eq.s32.totalorder %s19, 1
      %p120 = por %p118, %p119
      %p121 = scmp.ne.s32.totalorder %s113, %s116
      %p122 = scmp.eq.s32.totalorder %s19, 0
      %p123 = por %p121, %p122
      %p124 = scmp.ne.s32.totalorder %s113, %s116
      %p125 = scmp.eq.s32.totalorder %s24, 1
      %p126 = por %p124, %p125
      %p127 = scmp.ne.s32.totalorder %s116, %s117
      %p128 = scmp.eq.s32.totalorder %s24, 0
      %p129 = por %p127, %p128
      %p130 = scmp.ne.s32.totalorder %s116, %s117
      %p131 = scmp.eq.s32.totalorder %s25, 1
      %p132 = por %p130, %p131
      %p134 = scmp.ne.s32.totalorder %s117, %s133
      %p135 = scmp.eq.s32.totalorder %s25, 0
      %p136 = por %p134, %p135
      %s137 = ssub.s32 %s19, %s26
      %p138 = scmp.eq.s32.totalorder %s137, 0
      %s140 = sadd.s32 %s139, 1
      %s141 = scalar_select %p138, %s139, %s140
      %p144 = pneg %p138
      %p145 = scmp.eq.s32.totalorder %s19, 1
      %p146 = por %p144, %p145
      %p147 = scmp.ne.s32.totalorder %s139, %s142
      %p148 = scmp.eq.s32.totalorder %s19, 0
      %p149 = por %p147, %p148
      %p150 = scmp.ne.s32.totalorder %s139, %s142
      %p151 = scmp.eq.s32.totalorder %s24, 1
      %p152 = por %p150, %p151
      %p153 = scmp.ne.s32.totalorder %s142, %s143
      %p154 = scmp.eq.s32.totalorder %s24, 0
      %p155 = por %p153, %p154
      %p156 = scmp.ne.s32.totalorder %s142, %s143
      %p157 = scmp.eq.s32.totalorder %s25, 1
      %p158 = por %p156, %p157
      %p160 = scmp.ne.s32.totalorder %s143, %s159
      %p161 = scmp.eq.s32.totalorder %s25, 0
      %p162 = por %p160, %p161
      %s163 = ssub.s32 %s19, %s26
      %p164 = scmp.eq.s32.totalorder %s163, 0
      %s166 = sadd.s32 %s165, 1
      %s167 = scalar_select %p164, %s165, %s166
      %p170 = pneg %p164
      %p171 = scmp.eq.s32.totalorder %s19, 1
      %p172 = por %p170, %p171
      %p173 = scmp.ne.s32.totalorder %s165, %s168
      %p174 = scmp.eq.s32.totalorder %s19, 0
      %p175 = por %p173, %p174
      %p176 = scmp.ne.s32.totalorder %s165, %s168
      %p177 = scmp.eq.s32.totalorder %s24, 1
      %p178 = por %p176, %p177
      %p179 = scmp.ne.s32.totalorder %s168, %s169
      %p180 = scmp.eq.s32.totalorder %s24, 0
      %p181 = por %p179, %p180
      %p182 = scmp.ne.s32.totalorder %s168, %s169
      %p183 = scmp.eq.s32.totalorder %s25, 1
      %p184 = por %p182, %p183
      %p186 = scmp.ne.s32.totalorder %s169, %s185
      %p187 = scmp.eq.s32.totalorder %s25, 0
      %p188 = por %p186, %p187
      %s189 = ssub.s32 %s19, %s26
      %p190 = scmp.eq.s32.totalorder %s189, 0
      %s192 = sadd.s32 %s191, 1
      %s193 = scalar_select %p190, %s191, %s192
      %p196 = pneg %p190
      %p197 = scmp.eq.s32.totalorder %s19, 1
      %p198 = por %p196, %p197
      %p199 = scmp.ne.s32.totalorder %s191, %s194
      %p200 = scmp.eq.s32.totalorder %s19, 0
      %p201 = por %p199, %p200
      %p202 = scmp.ne.s32.totalorder %s191, %s194
      %p203 = scmp.eq.s32.totalorder %s24, 1
      %p204 = por %p202, %p203
      %p205 = scmp.ne.s32.totalorder %s194, %s195
      %p206 = scmp.eq.s32.totalorder %s24, 0
      %p207 = por %p205, %p206
      %p208 = scmp.ne.s32.totalorder %s194, %s195
      %p209 = scmp.eq.s32.totalorder %s25, 1
      %p210 = por %p208, %p209
      %p212 = scmp.ne.s32.totalorder %s195, %s211
      %p213 = scmp.eq.s32.totalorder %s25, 0
      %p214 = por %p212, %p213
      %s215 = ssub.s32 %s19, %s26
      %p216 = scmp.eq.s32.totalorder %s215, 0
      %s218 = sadd.s32 %s217, 1
      %s219 = scalar_select %p216, %s217, %s218
      %p222 = pneg %p216
      %p223 = scmp.eq.s32.totalorder %s19, 1
      %p224 = por %p222, %p223
      %p225 = scmp.ne.s32.totalorder %s217, %s220
      %p226 = scmp.eq.s32.totalorder %s19, 0
      %p227 = por %p225, %p226
      %p228 = scmp.ne.s32.totalorder %s217, %s220
      %p229 = scmp.eq.s32.totalorder %s24, 1
      %p230 = por %p228, %p229
      %p231 = scmp.ne.s32.totalorder %s220, %s221
      %p232 = scmp.eq.s32.totalorder %s24, 0
      %p233 = por %p231, %p232
      %p234 = scmp.ne.s32.totalorder %s220, %s221
      %p235 = scmp.eq.s32.totalorder %s25, 1
      %p236 = por %p234, %p235
      %p238 = scmp.ne.s32.totalorder %s221, %s237
      %p239 = scmp.eq.s32.totalorder %s25, 0
      %p240 = por %p238, %p239
      %s241 = ssub.s32 %s19, %s26
      %p242 = scmp.eq.s32.totalorder %s241, 0
      %s244 = sadd.s32 %s243, 1
      %s245 = scalar_select %p242, %s243, %s244
      %p248 = pneg %p242
      %p249 = scmp.eq.s32.totalorder %s19, 1
      %p250 = por %p248, %p249
      %p251 = scmp.ne.s32.totalorder %s243, %s246
      %p252 = scmp.eq.s32.totalorder %s19, 0
      %p253 = por %p251, %p252
      %p254 = scmp.ne.s32.totalorder %s243, %s246
      %p255 = scmp.eq.s32.totalorder %s24, 1
      %p256 = por %p254, %p255
      %p257 = scmp.ne.s32.totalorder %s246, %s247
      %p258 = scmp.eq.s32.totalorder %s24, 0
      %p259 = por %p257, %p258
      %p260 = scmp.ne.s32.totalorder %s246, %s247
      %p261 = scmp.eq.s32.totalorder %s25, 1
      %p262 = por %p260, %p261
      %p264 = scmp.ne.s32.totalorder %s247, %s263
      %p265 = scmp.eq.s32.totalorder %s25, 0
      %p266 = por %p264, %p265
      %s268 = sadd.s32 %s267, 1
      %p271 = scmp.eq.s32.totalorder %s19, 1
      %p272 = scmp.ne.s32.totalorder %s267, %s269
      %p273 = scmp.eq.s32.totalorder %s19, 0
      %p274 = por %p272, %p273
      %p275 = scmp.ne.s32.totalorder %s267, %s269
      %p276 = scmp.eq.s32.totalorder %s24, 1
      %p277 = por %p275, %p276
      %p278 = scmp.ne.s32.totalorder %s269, %s270
      %p279 = scmp.eq.s32.totalorder %s24, 0
      %p280 = por %p278, %p279
      %p281 = scmp.ne.s32.totalorder %s269, %s270
      %p282 = scmp.eq.s32.totalorder %s25, 1
      %p283 = por %p281, %p282
      %p285 = scmp.ne.s32.totalorder %s270, %s284
      %p286 = scmp.eq.s32.totalorder %s25, 0
      %p287 = por %p285, %p286
      %s288 = ssub.s32 %s19, %s26
      %p289 = scmp.eq.s32.totalorder %s288, 0
      %s291 = sadd.s32 %s290, 1
      %s292 = scalar_select %p289, %s290, %s291
      %p295 = pneg %p289
      %p296 = scmp.eq.s32.totalorder %s19, 1
      %p297 = por %p295, %p296
      %p298 = scmp.ne.s32.totalorder %s290, %s293
      %p299 = scmp.eq.s32.totalorder %s19, 0
      %p300 = por %p298, %p299
      %p301 = scmp.ne.s32.totalorder %s290, %s293
      %p302 = scmp.eq.s32.totalorder %s24, 1
      %p303 = por %p301, %p302
      %p304 = scmp.ne.s32.totalorder %s293, %s294
      %p305 = scmp.eq.s32.totalorder %s24, 0
      %p306 = por %p304, %p305
      %p307 = scmp.ne.s32.totalorder %s293, %s294
      %p308 = scmp.eq.s32.totalorder %s25, 1
      %p309 = por %p307, %p308
      %p311 = scmp.ne.s32.totalorder %s294, %s310
      %p312 = scmp.eq.s32.totalorder %s25, 0
      %p313 = por %p311, %p312
      %p314 = scmp.le.s32.totalorder 1, %s19
      %p315 = scmp.lt.s32.totalorder %s19, 3
      %p316 = pnand %p314, %p315
      %p317 = pneg %p316
      // Predicated region
      $region9: #{decoder_forward.1} parent=5 // pred_check
        _
      $region10: #{decoder_forward.1} parent=5 // pred_check_branch
        %319 = sbr.rel (%p316) target = $region12
      $region11: #{decoder_forward.1} parent=5 // pred_region
        %s320 = ssub.s32 %s19, 1
        // Predicated region
        $region13: #{decoder_forward.1} parent=11 // pred_check
          %p321 = pneg %p40
        $region14: #{decoder_forward.1} parent=11 // pred_check_branch
          %323 = sbr.rel (%p321) target = $region16
        $region15: #{decoder_forward.1} parent=11 // pred_region
          _
        $region16: #{decoder_forward.1} parent=11 // pred_fallthru
          _
        // Predicated region
        $region17: #{decoder_forward.1} parent=11 // pred_check
          %p324 = pneg %p61
        $region18: #{decoder_forward.1} parent=11 // pred_check_branch
          %326 = sbr.rel (%p324) target = $region20
        $region19: #{decoder_forward.1} parent=11 // pred_region
          _
        $region20: #{decoder_forward.1} parent=11 // pred_fallthru
          _
        // Predicated region
        $region21: #{decoder_forward.1} parent=11 // pred_check
          %p327 = pneg %p82
        $region22: #{decoder_forward.1} parent=11 // pred_check_branch
          %329 = sbr.rel (%p327) target = $region24
        $region23: #{decoder_forward.1} parent=11 // pred_region
          _
        $region24: #{decoder_forward.1} parent=11 // pred_fallthru
          _
        // Predicated region
        $region25: #{decoder_forward.1} parent=11 // pred_check
          %p330 = pneg %p103
        $region26: #{decoder_forward.1} parent=11 // pred_check_branch
          %332 = sbr.rel (%p330) target = $region28
        $region27: #{decoder_forward.1} parent=11 // pred_region
          _
        $region28: #{decoder_forward.1} parent=11 // pred_fallthru
          _
      $region12: #{decoder_forward.1} parent=5 // pred_fallthru
        _
      %p333 = scmp.lt.s32.totalorder %s19, 2
      // Predicated region
      $region29: #{decoder_forward.1} parent=5 // pred_check
        %p334 = pneg %p333
      $region30: #{decoder_forward.1} parent=5 // pred_check_branch
        %336 = sbr.rel (%p334) target = $region32
      $region31: #{decoder_forward.1} parent=5 // pred_region
        // Predicated region
        $region33: #{decoder_forward.1} parent=31 // pred_check
          %p337 = pneg %p123
        $region34: #{decoder_forward.1} parent=31 // pred_check_branch
          %339 = sbr.rel (%p337) target = $region36
        $region35: #{decoder_forward.1} parent=31 // pred_region
          %p340 = scmp.lt.s32.totalorder %s19, 1
          %s341 = scalar_select %p340, %s19, 1
          %s342 = scalar_lea.vmem %s4, %s341
        $region36: #{decoder_forward.1} parent=31 // pred_fallthru
          _
        // Predicated region
        $region37: #{decoder_forward.1} parent=31 // pred_check
          %p343 = pneg %p149
        $region38: #{decoder_forward.1} parent=31 // pred_check_branch
          %345 = sbr.rel (%p343) target = $region40
        $region39: #{decoder_forward.1} parent=31 // pred_region
          %p346 = scmp.lt.s32.totalorder %s19, 1
          %s347 = scalar_select %p346, %s19, 1
          %s348 = smul.addr %s347, 4
          %s349 = smul.addr %s348, 4
          %s350 = scalar_lea.vmem %s5, %s349
        $region40: #{decoder_forward.1} parent=31 // pred_fallthru
          _
        // Predicated region
        $region41: #{decoder_forward.1} parent=31 // pred_check
          %p351 = pneg %p175
        $region42: #{decoder_forward.1} parent=31 // pred_check_branch
          %353 = sbr.rel (%p351) target = $region44
        $region43: #{decoder_forward.1} parent=31 // pred_region
          %p354 = scmp.lt.s32.totalorder %s19, 1
          %s355 = scalar_select %p354, %s19, 1
          %s356 = smul.addr %s355, 4
          %s357 = smul.addr %s356, 4
          %s358 = scalar_lea.vmem %s6, %s357
        $region44: #{decoder_forward.1} parent=31 // pred_fallthru
          _
        // Predicated region
        $region45: #{decoder_forward.1} parent=31 // pred_check
          %p359 = pneg %p201
        $region46: #{decoder_forward.1} parent=31 // pred_check_branch
          %361 = sbr.rel (%p359) target = $region48
        $region47: #{decoder_forward.1} parent=31 // pred_region
          %p362 = scmp.lt.s32.totalorder %s19, 1
          %s363 = scalar_select %p362, %s19, 1
          %s364 = scalar_lea.vmem %s7, %s363
        $region48: #{decoder_forward.1} parent=31 // pred_fallthru
          _
        // Predicated region
        $region49: #{decoder_forward.1} parent=31 // pred_check
          %p365 = pneg %p227
        $region50: #{decoder_forward.1} parent=31 // pred_check_branch
          %367 = sbr.rel (%p365) target = $region52
        $region51: #{decoder_forward.1} parent=31 // pred_region
          %p368 = scmp.lt.s32.totalorder %s19, 1
          %s369 = scalar_select %p368, %s19, 1
          %s370 = smul.addr %s369, 4
          %s371 = smul.addr %s370, 4
          %s372 = scalar_lea.vmem %s8, %s371
        $region52: #{decoder_forward.1} parent=31 // pred_fallthru
          _
        // Predicated region
        $region53: #{decoder_forward.1} parent=31 // pred_check
          %p373 = pneg %p253
        $region54: #{decoder_forward.1} parent=31 // pred_check_branch
          %375 = sbr.rel (%p373) target = $region56
        $region55: #{decoder_forward.1} parent=31 // pred_region
          %p376 = scmp.lt.s32.totalorder %s19, 1
          %s377 = scalar_select %p376, %s19, 1
          %s378 = smul.addr %s377, 8
          %s379 = smul.addr %s378, 4
          %s380 = scalar_lea.vmem %s9, %s379
        $region56: #{decoder_forward.1} parent=31 // pred_fallthru
          _
      $region32: #{decoder_forward.1} parent=5 // pred_fallthru
        _
      %p381 = scmp.le.s32.totalorder 1, %s19
      %p382 = scmp.lt.s32.totalorder %s19, 3
      %p383 = pnand %p381, %p382
      %p384 = pneg %p383
      // Predicated region
      $region57: #{decoder_forward.1} parent=5 // pred_check
        _
      $region58: #{decoder_forward.1} parent=5 // pred_check_branch
        %386 = sbr.rel (%p383) target = $region60
      $region59: #{decoder_forward.1} parent=5 // pred_region
        %s387 = ssub.s32 %s19, 1
        %p388 = pneg %p40
        %p389 = pneg %p37
        %p390 = pneg %p61
        %p391 = pneg %p58
        %p392 = pneg %p82
        %p393 = pneg %p79
        %p394 = pneg %p103
        %p395 = pneg %p100
        %p396 = scmp.lt.s32.totalorder %s24, 1
        %s397 = scalar_select %p396, %s24, 1
        %s398 = scalar_lea.vmem %s4, %s397
        %p399 = pneg %p129
        %p400 = pneg %p126
        %p401 = scmp.lt.s32.totalorder %s24, 1
        %s402 = scalar_select %p401, %s24, 1
        %s403 = smul.addr %s402, 4
        %s404 = smul.addr %s403, 4
        %s405 = scalar_lea.vmem %s5, %s404
        %p406 = pneg %p155
        %p407 = pneg %p152
        %p408 = scmp.lt.s32.totalorder %s24, 1
        %s409 = scalar_select %p408, %s24, 1
        %s410 = smul.addr %s409, 4
        %s411 = smul.addr %s410, 4
        %s412 = scalar_lea.vmem %s6, %s411
        %p413 = pneg %p181
        %p414 = pneg %p178
        %p415 = scmp.lt.s32.totalorder %s24, 1
        %s416 = scalar_select %p415, %s24, 1
        %s417 = scalar_lea.vmem %s7, %s416
        %p418 = pneg %p207
        %p419 = pneg %p204
        %p420 = scmp.lt.s32.totalorder %s24, 1
        %s421 = scalar_select %p420, %s24, 1
        %s422 = smul.addr %s421, 4
        %s423 = smul.addr %s422, 4
        %s424 = scalar_lea.vmem %s8, %s423
        %p425 = pneg %p233
        %p426 = pneg %p230
        %p427 = scmp.lt.s32.totalorder %s24, 1
        %s428 = scalar_select %p427, %s24, 1
        %s429 = smul.addr %s428, 8
        %s430 = smul.addr %s429, 4
        %s431 = scalar_lea.vmem %s9, %s430
        %p432 = pneg %p259
        %p433 = pneg %p256
        %p434 = pneg %p280
        %p435 = pneg %p277
        %p436 = pneg %p306
        %p437 = pneg %p303
        %p438 = scmp.lt.s32.totalorder %s24, 1
        %s439 = scalar_select %p438, %s24, 1
        %s440 = smul.addr %s439, 2
        %s441 = smul.addr %s440, 4
        %s442 = scalar_lea.vmem %s11, %s441
        %p443 = scmp.lt.s32.totalorder %s24, 1
        %s444 = scalar_select %p443, %s24, 1
        %s445 = scalar_lea.vmem %s4, %s444
        %p446 = scmp.lt.s32.totalorder %s24, 1
        %s447 = scalar_select %p446, %s24, 1
        %s448 = smul.addr %s447, 4
        %s449 = smul.addr %s448, 4
        %s450 = scalar_lea.vmem %s5, %s449
        %p451 = scmp.lt.s32.totalorder %s24, 1
        %s452 = scalar_select %p451, %s24, 1
        %s453 = smul.addr %s452, 4
        %s454 = smul.addr %s453, 4
        %s455 = scalar_lea.vmem %s6, %s454
        %p456 = scmp.lt.s32.totalorder %s24, 1
        %s457 = scalar_select %p456, %s24, 1
        %s458 = scalar_lea.vmem %s7, %s457
        %p459 = scmp.lt.s32.totalorder %s24, 1
        %s460 = scalar_select %p459, %s24, 1
        %s461 = smul.addr %s460, 4
        %s462 = smul.addr %s461, 4
        %s463 = scalar_lea.vmem %s8, %s462
        %p464 = scmp.lt.s32.totalorder %s24, 1
        %s465 = scalar_select %p464, %s24, 1
        %s466 = smul.addr %s465, 8
        %s467 = smul.addr %s466, 4
        %s468 = scalar_lea.vmem %s9, %s467
        %p469 = scmp.lt.s32.totalorder %s24, 1
        %s470 = scalar_select %p469, %s24, 1
        %s471 = smul.addr %s470, 2
        %s472 = smul.addr %s471, 4
        %s473 = scalar_lea.vmem %s11, %s472
        %p475 = scmp.eq.s32.totalorder %s24, 0
        // Predicated region
        $region61: #{decoder_forward.1} parent=59 // pred_check
          %p476 = pneg %p475
        $region62: #{decoder_forward.1} parent=59 // pred_check_branch
          %478 = sbr.rel (%p476) target = $region64
        $region63: #{decoder_forward.1} parent=59 // pred_region
          %v479 = vld [vmem:[%s0] sm:$0xff]
          %v480 = vld [vmem:[%s0 + $0x8] sm:$0xff]
          %vm481 = vcmask 261120
          %482 = vst.msk [vmem:[#allocation2] sm:$0xff] %vm481, %v479
          %483 = vst.msk [vmem:[#allocation2 + $0x8] sm:$0xff] %vm481, %v480
        $region64: #{decoder_forward.1} parent=59 // pred_fallthru
          _
        %v484 = vld [vmem:[#allocation2] sm:$0xff]
        %v485 = vld [vmem:[#allocation2 + $0x8] sm:$0xff]
        %v486 = vlaneseq
        %v487 = vshrl.u32 %v486, 7
        %v488 = vlaneseq
        %v489 = vand.u32 %v488, 127
        %vm490 = vcmp.ge.s32.totalorder %v487, %v489
        %v491 = vld [vmem:[%s445] sm:$0x1]
        %v492 = vmul.f32 %v484, %v484
        %v493 = vmul.f32 %v485, %v485
        %vm494 = vcmask 261120
        %v495 = vsel %vm494, %v492, 0.0
        %496 = vadd.xlane.f32.xlu0 %v495
        %v497 = vpop.xlane.xlu0 %496
        %v498 = vsel %vm494, %v493, 0.0
        %499 = vadd.xlane.f32.xlu0 %v498
        %v500 = vpop.xlane.xlu0 %499
        %v501 = vrcp.pop 32.0
        %v502 = vmul.f32 %v497, %v501
        %v503 = vmul.f32 %v500, %v501
        %v504 = vadd.f32 %v502, 1e-06
        %v505 = vadd.f32 %v503, 1e-06
        %v506 = vrsqrt.pop %v504
        %v507 = vrsqrt.pop %v505
        %v508 = vmul.f32 %v484, %v506
        %v509 = vmul.f32 %v485, %v507
        %v511 = vlaneseq
        %v512 = vshrl.u32 %v511, 7
        %v513 = vsub.s32 0, %v512
        %v514 = vrot.slane %v491, %v513
        %v516 = vmul.f32 %v508, %v514
        %v517 = vmul.f32 %v509, %v514
        %v518 = vpack.c.bf16 %v517, %v516
        %v519 = vld [vmem:[%s450] sm:$0xf]
        %v520 = vld [vmem:[%s450 + $0x4] sm:$0xf]
        %v521 = vld [vmem:[%s450 + $0x8] sm:$0xf]
        %v522 = vld [vmem:[%s450 + $0xc] sm:$0xf]
        %v527 = vunpack.c.l.b16 %v519
        %v528 = vunpack.c.l.b16 %v520
        %v529 = vunpack.c.l.b16 %v521
        %v530 = vunpack.c.l.b16 %v522
        %v531 = vpack.c.b16 %v528, %v527
        %v532 = vpack.c.b16 %v530, %v529
        %v536 = vsel %vm494, %v518, 0
        %538 = vmatprep.subr.bf16.mxu0 0
        %539 = vmatpush1.bf16.msra.mxu0 %v531
        %540 = vmatprep.subr.bf16.mxu0 0
        %541 = vmatpush1.bf16.msra.mxu0 %v532
        %542 = vmatprep.subr.bf16.mxu0 0
        %543 = vmatpush1.bf16.msra.mxu0 0
        %544 = vmatprep.subr.bf16.mxu0 0
        %545 = vmatpush1.bf16.msra.mxu0 0
        %546 = vmatprep.subr.bf16.mxu0 0
        %547 = vmatpush1.bf16.msra.mxu0 0
        %548 = vmatprep.subr.bf16.mxu0 0
        %549 = vmatpush1.bf16.msra.mxu0 0
        %550 = vmatprep.subr.bf16.mxu0 0
        %551 = vmatpush1.bf16.msra.mxu0 0
        %552 = vmatprep.subr.bf16.mxu0 0
        %553 = vmatpush1.bf16.msra.mxu0 0
        %554 = vmatprep.subr.bf16.mxu0 0
        %555 = vmatpush1.bf16.msra.mxu0 0
        %556 = vmatprep.subr.bf16.mxu0 0
        %557 = vmatpush1.bf16.msra.mxu0 0
        %558 = vmatprep.subr.bf16.mxu0 0
        %559 = vmatpush1.bf16.msra.mxu0 0
        %560 = vmatprep.subr.bf16.mxu0 0
        %561 = vmatpush1.bf16.msra.mxu0 0
        %562 = vmatprep.subr.bf16.mxu0 0
        %563 = vmatpush1.bf16.msra.mxu0 0
        %564 = vmatprep.subr.bf16.mxu0 0
        %565 = vmatpush1.bf16.msra.mxu0 0
        %566 = vmatprep.subr.bf16.mxu0 0
        %567 = vmatpush1.bf16.msra.mxu0 0
        %568 = vmatprep.subr.bf16.mxu0 0
        %569 = vmatpush1.bf16.msra.mxu0 0
        %570 = vmatprep.mubr.bf16.mxu0 0
        %571 = vmatmul.mubr.bf16.gmra.mrb[0].mxu0 %v536
        %v572 = vpop.f32.mrb[0].mxu0
        %v573 = vadd.f32 0.0, %v572
        %v574 = vpop.f32.mrb[0].mxu0
        %v575 = vpop.f32.mrb[0].mxu0
        %v576 = vadd.f32 0.0, %v575
        %v577 = vpop.f32.mrb[0].mxu0
        %578 = vdwg.mxu0
        %v579 = vpack.c.bf16 %v576, %v573
        %v580 = vld [vmem:[%s3] sm:$0xf]
        %v581 = vld [vmem:[%s3 + $0x4] sm:$0xf]
        %v582 = vld [vmem:[%s3 + $0x8] sm:$0xf]
        %v583 = vld [vmem:[%s3 + $0xc] sm:$0xf]
        %v584 = vld [vmem:[%s3 + $0x10] sm:$0xf]
        %v585 = vld [vmem:[%s3 + $0x14] sm:$0xf]
        %v592 = vunpack.c.l.b16 %v580
        %v593 = vunpack.c.l.b16 %v581
        %v594 = vunpack.c.l.b16 %v582
        %v595 = vunpack.c.l.b16 %v583
        %v596 = vunpack.c.l.b16 %v584
        %v597 = vunpack.c.l.b16 %v585
        %v598 = vpack.c.b16 %v593, %v592
        %v599 = vpack.c.b16 %v595, %v594
        %v600 = vpack.c.b16 %v597, %v596
        %vm604 = vcmask 392192
        %v606 = vsel %vm604, %v579, 0
        %608 = vmatprep.subr.bf16.mxu0 0
        %609 = vmatpush1.bf16.msra.mxu0 %v598
        %610 = vmatprep.subr.bf16.mxu0 0
        %611 = vmatpush1.bf16.msra.mxu0 %v599
        %612 = vmatprep.subr.bf16.mxu0 0
        %613 = vmatpush1.bf16.msra.mxu0 %v600
        %614 = vmatprep.subr.bf16.mxu0 0
        %615 = vmatpush1.bf16.msra.mxu0 0
        %616 = vmatprep.subr.bf16.mxu0 0
        %617 = vmatpush1.bf16.msra.mxu0 0
        %618 = vmatprep.subr.bf16.mxu0 0
        %619 = vmatpush1.bf16.msra.mxu0 0
        %620 = vmatprep.subr.bf16.mxu0 0
        %621 = vmatpush1.bf16.msra.mxu0 0
        %622 = vmatprep.subr.bf16.mxu0 0
        %623 = vmatpush1.bf16.msra.mxu0 0
        %624 = vmatprep.subr.bf16.mxu0 0
        %625 = vmatpush1.bf16.msra.mxu0 0
        %626 = vmatprep.subr.bf16.mxu0 0
        %627 = vmatpush1.bf16.msra.mxu0 0
        %628 = vmatprep.subr.bf16.mxu0 0
        %629 = vmatpush1.bf16.msra.mxu0 0
        %630 = vmatprep.subr.bf16.mxu0 0
        %631 = vmatpush1.bf16.msra.mxu0 0
        %632 = vmatprep.subr.bf16.mxu0 0
        %633 = vmatpush1.bf16.msra.mxu0 0
        %634 = vmatprep.subr.bf16.mxu0 0
        %635 = vmatpush1.bf16.msra.mxu0 0
        %636 = vmatprep.subr.bf16.mxu0 0
        %637 = vmatpush1.bf16.msra.mxu0 0
        %638 = vmatprep.subr.bf16.mxu0 0
        %639 = vmatpush1.bf16.msra.mxu0 0
        %640 = vmatprep.mubr.bf16.mxu0 0
        %641 = vmatmul.mubr.bf16.gmra.mrb[0].mxu0 %v606
        %v642 = vpop.f32.mrb[0].mxu0
        %v643 = vadd.f32 0.0, %v642
        %v644 = vpop.f32.mrb[0].mxu0
        %v645 = vpop.f32.mrb[0].mxu0
        %v646 = vadd.f32 0.0, %v645
        %v647 = vpop.f32.mrb[0].mxu0
        %648 = vdwg.mxu0
        %v649 = vld [vmem:[%s1] sm:$0xff]
        %v650 = vld [vmem:[%s1 + $0x8] sm:$0xff]
        %v651 = vmul.f32 %v573, %v649
        %v652 = vmul.f32 %v576, %v650
        %v653 = vld [vmem:[%s2] sm:$0xff]
        %v654 = vld [vmem:[%s2 + $0x8] sm:$0xff]
        %v655 = vmul.f32 %v643, %v653
        %v656 = vmul.f32 %v646, %v654
        %v657 = vadd.f32 %v651, %v655
        %v658 = vadd.f32 %v652, %v656
        %v659 = vpack.c.bf16 %v658, %v657
        %v661 = vunpack.c.l.b16 %v659
        %v662 = vunpack.c.h.b16 %v659
        %v663 = vpack.c.b16 %v661, %v661
        %v664 = vpack.c.b16 %v662, %v662
        %665 = vrot.lane.b32.xlu0 %v663, 96
        %v666 = vpop.permute.xlu0 %665
        %667 = vrot.lane.b32.xlu0 %v664, 96
        %v668 = vpop.permute.xlu0 %667
        %vm671 = vcmask 125952
        %672 = vst.msk [vmem:[%s473] sm:$0xf] %vm671, %v666
        %673 = vst.msk [vmem:[%s473 + $0x4] sm:$0xf] %vm671, %v668
        %v675 = vunpack.c.l.b16 %v579
        %v676 = vunpack.c.h.b16 %v579
        %v677 = vpack.c.b16 %v675, %v675
        %v678 = vpack.c.b16 %v676, %v676
        %679 = vrot.lane.b32.xlu0 %v677, 96
        %v680 = vpop.permute.xlu0 %679
        %681 = vrot.lane.b32.xlu0 %v678, 96
        %v682 = vpop.permute.xlu0 %681
        %vm685 = vcmask 257152
        %686 = vst.msk [vmem:[%s473] sm:$0xf] %vm685, %v680
        %687 = vst.msk [vmem:[%s473 + $0x4] sm:$0xf] %vm685, %v682
        %690 = vrot.lane.b32.xlu0 %v657, 120
        %v691 = vpop.permute.xlu0 %690
        %692 = vrot.lane.b32.xlu0 %v658, 120
        %v693 = vpop.permute.xlu0 %692
        %696 = vrot.lane.b32.xlu0 %v657, 112
        %v697 = vpop.permute.xlu0 %696
        %698 = vrot.lane.b32.xlu0 %v658, 112
        %v699 = vpop.permute.xlu0 %698
        %702 = vrot.lane.b32.xlu0 %v657, 104
        %v703 = vpop.permute.xlu0 %702
        %704 = vrot.lane.b32.xlu0 %v658, 104
        %v705 = vpop.permute.xlu0 %704
        %v708 = vpack.c.bf16 %v657, %v657
        %v709 = vpack.c.bf16 %v658, %v658
        %v710 = vpack.c.bf16 %v691, %v691
        %v711 = vpack.c.bf16 %v693, %v693
        %v712 = vpack.c.bf16 %v697, %v697
        %v713 = vpack.c.bf16 %v699, %v699
        %v714 = vpack.c.bf16 %v703, %v703
        %v715 = vpack.c.bf16 %v705, %v705
        %718 = vrot.lane.b32.xlu0 %v573, 120
        %v719 = vpop.permute.xlu0 %718
        %720 = vrot.lane.b32.xlu0 %v576, 120
        %v721 = vpop.permute.xlu0 %720
        %v724 = vpack.c.bf16 %v573, %v573
        %v725 = vpack.c.bf16 %v576, %v576
        %v726 = vpack.c.bf16 %v719, %v719
        %v727 = vpack.c.bf16 %v721, %v721
        %729 = vrot.lane.b32.xlu0 %v708, 96
        %v730 = vpop.permute.xlu0 %729
        %vm731 = vcmask 64512
        %v733 = vsel %vm731, %v708, 0
        %v736 = vsel %vm731, %v730, 0
        %738 = vmatprep.subr.bf16.mxu0 0
        %739 = vmatpush1.bf16.xpose.msra.mxu0 %v736
        %740 = vmatprep.subr.bf16.mxu0 0
        %741 = vmatpush1.bf16.xpose.msra.mxu0 0
        %742 = vmatprep.subr.bf16.mxu0 0
        %743 = vmatpush1.bf16.xpose.msra.mxu0 0
        %744 = vmatprep.subr.bf16.mxu0 0
        %745 = vmatpush1.bf16.xpose.msra.mxu0 0
        %746 = vmatprep.subr.bf16.mxu0 0
        %747 = vmatpush1.bf16.xpose.msra.mxu0 0
        %748 = vmatprep.subr.bf16.mxu0 0
        %749 = vmatpush1.bf16.xpose.msra.mxu0 0
        %750 = vmatprep.subr.bf16.mxu0 0
        %751 = vmatpush1.bf16.xpose.msra.mxu0 0
        %752 = vmatprep.subr.bf16.mxu0 0
        %753 = vmatpush1.bf16.xpose.msra.mxu0 0
        %754 = vmatprep.subr.bf16.mxu0 0
        %755 = vmatpush1.bf16.xpose.msra.mxu0 0
        %756 = vmatprep.subr.bf16.mxu0 0
        %757 = vmatpush1.bf16.xpose.msra.mxu0 0
        %758 = vmatprep.subr.bf16.mxu0 0
        %759 = vmatpush1.bf16.xpose.msra.mxu0 0
        %760 = vmatprep.subr.bf16.mxu0 0
        %761 = vmatpush1.bf16.xpose.msra.mxu0 0
        %762 = vmatprep.subr.bf16.mxu0 0
        %763 = vmatpush1.bf16.xpose.msra.mxu0 0
        %764 = vmatprep.subr.bf16.mxu0 0
        %765 = vmatpush1.bf16.xpose.msra.mxu0 0
        %766 = vmatprep.subr.bf16.mxu0 0
        %767 = vmatpush1.bf16.xpose.msra.mxu0 0
        %768 = vmatprep.subr.bf16.mxu0 0
        %769 = vmatpush1.bf16.xpose.msra.mxu0 0
        %770 = vmatprep.mubr.bf16.mxu0 0
        %771 = vmatmul.mubr.bf16.gmra.mrb[0].mxu0 %v733
        %v772 = vpop.f32.mrb[0].mxu0
        %v773 = vadd.f32 0.0, %v772
        %v774 = vpop.f32.mrb[0].mxu0
        %v775 = vpop.f32.mrb[0].mxu0
        %v776 = vpop.f32.mrb[0].mxu0
        %777 = vdwg.mxu0
        %779 = vrot.lane.b32.xlu0 %v709, 96
        %v780 = vpop.permute.xlu0 %779
        %v782 = vsel %vm731, %v709, 0
        %v785 = vsel %vm731, %v780, 0
        %787 = vmatprep.subr.bf16.mxu0 0
        %788 = vmatpush1.bf16.xpose.msra.mxu0 %v785
        %789 = vmatprep.subr.bf16.mxu0 0
        %790 = vmatpush1.bf16.xpose.msra.mxu0 0
        %791 = vmatprep.subr.bf16.mxu0 0
        %792 = vmatpush1.bf16.xpose.msra.mxu0 0
        %793 = vmatprep.subr.bf16.mxu0 0
        %794 = vmatpush1.bf16.xpose.msra.mxu0 0
        %795 = vmatprep.subr.bf16.mxu0 0
        %796 = vmatpush1.bf16.xpose.msra.mxu0 0
        %797 = vmatprep.subr.bf16.mxu0 0
        %798 = vmatpush1.bf16.xpose.msra.mxu0 0
        %799 = vmatprep.subr.bf16.mxu0 0
        %800 = vmatpush1.bf16.xpose.msra.mxu0 0
        %801 = vmatprep.subr.bf16.mxu0 0
        %802 = vmatpush1.bf16.xpose.msra.mxu0 0
        %803 = vmatprep.subr.bf16.mxu0 0
        %804 = vmatpush1.bf16.xpose.msra.mxu0 0
        %805 = vmatprep.subr.bf16.mxu0 0
        %806 = vmatpush1.bf16.xpose.msra.mxu0 0
        %807 = vmatprep.subr.bf16.mxu0 0
        %808 = vmatpush1.bf16.xpose.msra.mxu0 0
        %809 = vmatprep.subr.bf16.mxu0 0
        %810 = vmatpush1.bf16.xpose.msra.mxu0 0
        %811 = vmatprep.subr.bf16.mxu0 0
        %812 = vmatpush1.bf16.xpose.msra.mxu0 0
        %813 = vmatprep.subr.bf16.mxu0 0
        %814 = vmatpush1.bf16.xpose.msra.mxu0 0
        %815 = vmatprep.subr.bf16.mxu0 0
        %816 = vmatpush1.bf16.xpose.msra.mxu0 0
        %817 = vmatprep.subr.bf16.mxu0 0
        %818 = vmatpush1.bf16.xpose.msra.mxu0 0
        %819 = vmatprep.mubr.bf16.mxu0 0
        %820 = vmatmul.mubr.bf16.gmra.mrb[0].mxu0 %v782
        %v821 = vpop.f32.mrb[0].mxu0
        %v822 = vadd.f32 0.0, %v821
        %v823 = vpop.f32.mrb[0].mxu0
        %v824 = vpop.f32.mrb[0].mxu0
        %v825 = vpop.f32.mrb[0].mxu0
        %826 = vdwg.mxu0
        %v828 = vsel %vm731, %v710, 0
        %830 = vmatprep.subr.bf16.mxu0 0
        %831 = vmatpush1.bf16.xpose.msra.mxu0 %v736
        %832 = vmatprep.subr.bf16.mxu0 0
        %833 = vmatpush1.bf16.xpose.msra.mxu0 0
        %834 = vmatprep.subr.bf16.mxu0 0
        %835 = vmatpush1.bf16.xpose.msra.mxu0 0
        %836 = vmatprep.subr.bf16.mxu0 0
        %837 = vmatpush1.bf16.xpose.msra.mxu0 0
        %838 = vmatprep.subr.bf16.mxu0 0
        %839 = vmatpush1.bf16.xpose.msra.mxu0 0
        %840 = vmatprep.subr.bf16.mxu0 0
        %841 = vmatpush1.bf16.xpose.msra.mxu0 0
        %842 = vmatprep.subr.bf16.mxu0 0
        %843 = vmatpush1.bf16.xpose.msra.mxu0 0
        %844 = vmatprep.subr.bf16.mxu0 0
        %845 = vmatpush1.bf16.xpose.msra.mxu0 0
        %846 = vmatprep.subr.bf16.mxu0 0
        %847 = vmatpush1.bf16.xpose.msra.mxu0 0
        %848 = vmatprep.subr.bf16.mxu0 0
        %849 = vmatpush1.bf16.xpose.msra.mxu0 0
        %850 = vmatprep.subr.bf16.mxu0 0
        %851 = vmatpush1.bf16.xpose.msra.mxu0 0
        %852 = vmatprep.subr.bf16.mxu0 0
        %853 = vmatpush1.bf16.xpose.msra.mxu0 0
        %854 = vmatprep.subr.bf16.mxu0 0
        %855 = vmatpush1.bf16.xpose.msra.mxu0 0
        %856 = vmatprep.subr.bf16.mxu0 0
        %857 = vmatpush1.bf16.xpose.msra.mxu0 0
        %858 = vmatprep.subr.bf16.mxu0 0
        %859 = vmatpush1.bf16.xpose.msra.mxu0 0
        %860 = vmatprep.subr.bf16.mxu0 0
        %861 = vmatpush1.bf16.xpose.msra.mxu0 0
        %862 = vmatprep.mubr.bf16.mxu0 0
        %863 = vmatmul.mubr.bf16.gmra.mrb[0].mxu0 %v828
        %v864 = vpop.f32.mrb[0].mxu0
        %v865 = vadd.f32 0.0, %v864
        %v866 = vpop.f32.mrb[0].mxu0
        %v867 = vpop.f32.mrb[0].mxu0
        %v868 = vpop.f32.mrb[0].mxu0
        %869 = vdwg.mxu0
        %v871 = vsel %vm731, %v711, 0
        %873 = vmatprep.subr.bf16.mxu0 0
        %874 = vmatpush1.bf16.xpose.msra.mxu0 %v785
        %875 = vmatprep.subr.bf16.mxu0 0
        %876 = vmatpush1.bf16.xpose.msra.mxu0 0
        %877 = vmatprep.subr.bf16.mxu0 0
        %878 = vmatpush1.bf16.xpose.msra.mxu0 0
        %879 = vmatprep.subr.bf16.mxu0 0
        %880 = vmatpush1.bf16.xpose.msra.mxu0 0
        %881 = vmatprep.subr.bf16.mxu0 0
        %882 = vmatpush1.bf16.xpose.msra.mxu0 0
        %883 = vmatprep.subr.bf16.mxu0 0
        %884 = vmatpush1.bf16.xpose.msra.mxu0 0
        %885 = vmatprep.subr.bf16.mxu0 0
        %886 = vmatpush1.bf16.xpose.msra.mxu0 0
        %887 = vmatprep.subr.bf16.mxu0 0
        %888 = vmatpush1.bf16.xpose.msra.mxu0 0
        %889 = vmatprep.subr.bf16.mxu0 0
        %890 = vmatpush1.bf16.xpose.msra.mxu0 0
        %891 = vmatprep.subr.bf16.mxu0 0
        %892 = vmatpush1.bf16.xpose.msra.mxu0 0
        %893 = vmatprep.subr.bf16.mxu0 0
        %894 = vmatpush1.bf16.xpose.msra.mxu0 0
        %895 = vmatprep.subr.bf16.mxu0 0
        %896 = vmatpush1.bf16.xpose.msra.mxu0 0
        %897 = vmatprep.subr.bf16.mxu0 0
        %898 = vmatpush1.bf16.xpose.msra.mxu0 0
        %899 = vmatprep.subr.bf16.mxu0 0
        %900 = vmatpush1.bf16.xpose.msra.mxu0 0
        %901 = vmatprep.subr.bf16.mxu0 0
        %902 = vmatpush1.bf16.xpose.msra.mxu0 0
        %903 = vmatprep.subr.bf16.mxu0 0
        %904 = vmatpush1.bf16.xpose.msra.mxu0 0
        %905 = vmatprep.mubr.bf16.mxu0 0
        %906 = vmatmul.mubr.bf16.gmra.mrb[0].mxu0 %v871
        %v907 = vpop.f32.mrb[0].mxu0
        %v908 = vadd.f32 0.0, %v907
        %v909 = vpop.f32.mrb[0].mxu0
        %v910 = vpop.f32.mrb[0].mxu0
        %v911 = vpop.f32.mrb[0].mxu0
        %912 = vdwg.mxu0
        %914 = vrot.lane.b32.xlu0 %v710, 96
        %v915 = vpop.permute.xlu0 %914
        %v917 = vsel %vm731, %v712, 0
        %v920 = vsel %vm731, %v915, 0
        %922 = vmatprep.subr.bf16.mxu0 0
        %923 = vmatpush1.bf16.xpose.msra.mxu0 %v920
        %924 = vmatprep.subr.bf16.mxu0 0
        %925 = vmatpush1.bf16.xpose.msra.mxu0 0
        %926 = vmatprep.subr.bf16.mxu0 0
        %927 = vmatpush1.bf16.xpose.msra.mxu0 0
        %928 = vmatprep.subr.bf16.mxu0 0
        %929 = vmatpush1.bf16.xpose.msra.mxu0 0
        %930 = vmatprep.subr.bf16.mxu0 0
        %931 = vmatpush1.bf16.xpose.msra.mxu0 0
        %932 = vmatprep.subr.bf16.mxu0 0
        %933 = vmatpush1.bf16.xpose.msra.mxu0 0
        %934 = vmatprep.subr.bf16.mxu0 0
        %935 = vmatpush1.bf16.xpose.msra.mxu0 0
        %936 = vmatprep.subr.bf16.mxu0 0
        %937 = vmatpush1.bf16.xpose.msra.mxu0 0
        %938 = vmatprep.subr.bf16.mxu0 0
        %939 = vmatpush1.bf16.xpose.msra.mxu0 0
        %940 = vmatprep.subr.bf16.mxu0 0
        %941 = vmatpush1.bf16.xpose.msra.mxu0 0
        %942 = vmatprep.subr.bf16.mxu0 0
        %943 = vmatpush1.bf16.xpose.msra.mxu0 0
        %944 = vmatprep.subr.bf16.mxu0 0
        %945 = vmatpush1.bf16.xpose.msra.mxu0 0
        %946 = vmatprep.subr.bf16.mxu0 0
        %947 = vmatpush1.bf16.xpose.msra.mxu0 0
        %948 = vmatprep.subr.bf16.mxu0 0
        %949 = vmatpush1.bf16.xpose.msra.mxu0 0
        %950 = vmatprep.subr.bf16.mxu0 0
        %951 = vmatpush1.bf16.xpose.msra.mxu0 0
        %952 = vmatprep.subr.bf16.mxu0 0
        %953 = vmatpush1.bf16.xpose.msra.mxu0 0
        %954 = vmatprep.mubr.bf16.mxu0 0
        %955 = vmatmul.mubr.bf16.gmra.mrb[0].mxu0 %v917
        %v956 = vpop.f32.mrb[0].mxu0
        %v957 = vadd.f32 0.0, %v956
        %v958 = vpop.f32.mrb[0].mxu0
        %v959 = vpop.f32.mrb[0].mxu0
        %v960 = vpop.f32.mrb[0].mxu0
        %961 = vdwg.mxu0
        %963 = vrot.lane.b32.xlu0 %v711, 96
        %v964 = vpop.permute.xlu0 %963
        %v966 = vsel %vm731, %v713, 0
        %v969 = vsel %vm731, %v964, 0
        %971 = vmatprep.subr.bf16.mxu0 0
        %972 = vmatpush1.bf16.xpose.msra.mxu0 %v969
        %973 = vmatprep.subr.bf16.mxu0 0
        %974 = vmatpush1.bf16.xpose.msra.mxu0 0
        %975 = vmatprep.subr.bf16.mxu0 0
        %976 = vmatpush1.bf16.xpose.msra.mxu0 0
        %977 = vmatprep.subr.bf16.mxu0 0
        %978 = vmatpush1.bf16.xpose.msra.mxu0 0
        %979 = vmatprep.subr.bf16.mxu0 0
        %980 = vmatpush1.bf16.xpose.msra.mxu0 0
        %981 = vmatprep.subr.bf16.mxu0 0
        %982 = vmatpush1.bf16.xpose.msra.mxu0 0
        %983 = vmatprep.subr.bf16.mxu0 0
        %984 = vmatpush1.bf16.xpose.msra.mxu0 0
        %985 = vmatprep.subr.bf16.mxu0 0
        %986 = vmatpush1.bf16.xpose.msra.mxu0 0
        %987 = vmatprep.subr.bf16.mxu0 0
        %988 = vmatpush1.bf16.xpose.msra.mxu0 0
        %989 = vmatprep.subr.bf16.mxu0 0
        %990 = vmatpush1.bf16.xpose.msra.mxu0 0
        %991 = vmatprep.subr.bf16.mxu0 0
        %992 = vmatpush1.bf16.xpose.msra.mxu0 0
        %993 = vmatprep.subr.bf16.mxu0 0
        %994 = vmatpush1.bf16.xpose.msra.mxu0 0
        %995 = vmatprep.subr.bf16.mxu0 0
        %996 = vmatpush1.bf16.xpose.msra.mxu0 0
        %997 = vmatprep.subr.bf16.mxu0 0
        %998 = vmatpush1.bf16.xpose.msra.mxu0 0
        %999 = vmatprep.subr.bf16.mxu0 0
        %1000 = vmatpush1.bf16.xpose.msra.mxu0 0
        %1001 = vmatprep.subr.bf16.mxu0 0
        %1002 = vmatpush1.bf16.xpose.msra.mxu0 0
        %1003 = vmatprep.mubr.bf16.mxu0 0
        %1004 = vmatmul.mubr.bf16.gmra.mrb[0].mxu0 %v966
        %v1005 = vpop.f32.mrb[0].mxu0
        %v1006 = vadd.f32 0.0, %v1005
        %v1007 = vpop.f32.mrb[0].mxu0
        %v1008 = vpop.f32.mrb[0].mxu0
        %v1009 = vpop.f32.mrb[0].mxu0
        %1010 = vdwg.mxu0
        %v1012 = vsel %vm731, %v714, 0
        %1014 = vmatprep.subr.bf16.mxu0 0
        %1015 = vmatpush1.bf16.xpose.msra.mxu0 %v920
        %1016 = vmatprep.subr.bf16.mxu0 0
        %1017 = vmatpush1.bf16.xpose.msra.mxu0 0
        %1018 = vmatprep.subr.bf16.mxu0 0
        %1019 = vmatpush1.bf16.xpose.msra.mxu0 0
        %1020 = vmatprep.subr.bf16.mxu0 0
        %1021 = vmatpush1.bf16.xpose.msra.mxu0 0
        %1022 = vmatprep.subr.bf16.mxu0 0
        %1023 = vmatpush1.bf16.xpose.msra.mxu0 0
        %1024 = vmatprep.subr.bf16.mxu0 0
        %1025 = vmatpush1.bf16.xpose.msra.mxu0 0
        %1026 = vmatprep.subr.bf16.mxu0 0
        %1027 = vmatpush1.bf16.xpose.msra.mxu0 0
        %1028 = vmatprep.subr.bf16.mxu0 0
        %1029 = vmatpush1.bf16.xpose.msra.mxu0 0
        %1030 = vmatprep.subr.bf16.mxu0 0
        %1031 = vmatpush1.bf16.xpose.msra.mxu0 0
        %1032 = vmatprep.subr.bf16.mxu0 0
        %1033 = vmatpush1.bf16.xpose.msra.mxu0 0
        %1034 = vmatprep.subr.bf16.mxu0 0
        %1035 = vmatpush1.bf16.xpose.msra.mxu0 0
        %1036 = vmatprep.subr.bf16.mxu0 0
        %1037 = vmatpush1.bf16.xpose.msra.mxu0 0
        %1038 = vmatprep.subr.bf16.mxu0 0
        %1039 = vmatpush1.bf16.xpose.msra.mxu0 0
        %1040 = vmatprep.subr.bf16.mxu0 0
        %1041 = vmatpush1.bf16.xpose.msra.mxu0 0
        %1042 = vmatprep.subr.bf16.mxu0 0
        %1043 = vmatpush1.bf16.xpose.msra.mxu0 0
        %1044 = vmatprep.subr.bf16.mxu0 0
        %1045 = vmatpush1.bf16.xpose.msra.mxu0 0
        %1046 = vmatprep.mubr.bf16.mxu0 0
        %1047 = vmatmul.mubr.bf16.gmra.mrb[0].mxu0 %v1012
        %v1048 = vpop.f32.mrb[0].mxu0
        %v1049 = vadd.f32 0.0, %v1048
        %v1050 = vpop.f32.mrb[0].mxu0
        %v1051 = vpop.f32.mrb[0].mxu0
        %v1052 = vpop.f32.mrb[0].mxu0
        %1053 = vdwg.mxu0
        %v1055 = vsel %vm731, %v715, 0
        %1057 = vmatprep.subr.bf16.mxu0 0
        %1058 = vmatpush1.bf16.xpose.msra.mxu0 %v969
        %1059 = vmatprep.subr.bf16.mxu0 0
        %1060 = vmatpush1.bf16.xpose.msra.mxu0 0
        %1061 = vmatprep.subr.bf16.mxu0 0
        %1062 = vmatpush1.bf16.xpose.msra.mxu0 0
        %1063 = vmatprep.subr.bf16.mxu0 0
        %1064 = vmatpush1.bf16.xpose.msra.mxu0 0
        %1065 = vmatprep.subr.bf16.mxu0 0
        %1066 = vmatpush1.bf16.xpose.msra.mxu0 0
        %1067 = vmatprep.subr.bf16.mxu0 0
        %1068 = vmatpush1.bf16.xpose.msra.mxu0 0
        %1069 = vmatprep.subr.bf16.mxu0 0
        %1070 = vmatpush1.bf16.xpose.msra.mxu0 0
        %1071 = vmatprep.subr.bf16.mxu0 0
        %1072 = vmatpush1.bf16.xpose.msra.mxu0 0
        %1073 = vmatprep.subr.bf16.mxu0 0
        %1074 = vmatpush1.bf16.xpose.msra.mxu0 0
        %1075 = vmatprep.subr.bf16.mxu0 0
        %1076 = vmatpush1.bf16.xpose.msra.mxu0 0
        %1077 = vmatprep.subr.bf16.mxu0 0
        %1078 = vmatpush1.bf16.xpose.msra.mxu0 0
        %1079 = vmatprep.subr.bf16.mxu0 0
        %1080 = vmatpush1.bf16.xpose.msra.mxu0 0
        %1081 = vmatprep.subr.bf16.mxu0 0
        %1082 = vmatpush1.bf16.xpose.msra.mxu0 0
        %1083 = vmatprep.subr.bf16.mxu0 0
        %1084 = vmatpush1.bf16.xpose.msra.mxu0 0
        %1085 = vmatprep.subr.bf16.mxu0 0
        %1086 = vmatpush1.bf16.xpose.msra.mxu0 0
        %1087 = vmatprep.subr.bf16.mxu0 0
        %1088 = vmatpush1.bf16.xpose.msra.mxu0 0
        %1089 = vmatprep.mubr.bf16.mxu0 0
        %1090 = vmatmul.mubr.bf16.gmra.mrb[0].mxu0 %v1055
        %v1091 = vpop.f32.mrb[0].mxu0
        %v1092 = vadd.f32 0.0, %v1091
        %v1093 = vpop.f32.mrb[0].mxu0
        %v1094 = vpop.f32.mrb[0].mxu0
        %v1095 = vpop.f32.mrb[0].mxu0
        %1096 = vdwg.mxu0
        %v1097 = vsel %vm490, 1, 0
        %vm1098 = vcmp.eq.s32.totalorder %v1097, 1
        %v1099 = vsel %vm1098, %v773, -1e+30
        %v1100 = vsel %vm1098, %v822, -1e+30
        %v1101 = vsel %vm1098, %v865, -1e+30
        %v1102 = vsel %vm1098, %v908, -1e+30
        %v1103 = vsel %vm1098, %v957, -1e+30
        %v1104 = vsel %vm1098, %v1006, -1e+30
        %v1105 = vsel %vm1098, %v1049, -1e+30
        %v1106 = vsel %vm1098, %v1092, -1e+30
        %v1107 = vsel %vm731, %v1099, -inf
        %1108 = vmax.xlane.f32.xlu0 %v1107
        %v1109 = vpop.xlane.xlu0 %1108
        %v1110 = vsel %vm731, %v1100, -inf
        %1111 = vmax.xlane.f32.xlu0 %v1110
        %v1112 = vpop.xlane.xlu0 %1111
        %v1113 = vsel %vm731, %v1101, -inf
        %1114 = vmax.xlane.f32.xlu0 %v1113
        %v1115 = vpop.xlane.xlu0 %1114
        %v1116 = vsel %vm731, %v1102, -inf
        %1117 = vmax.xlane.f32.xlu0 %v1116
        %v1118 = vpop.xlane.xlu0 %1117
        %v1119 = vsel %vm731, %v1103, -inf
        %1120 = vmax.xlane.f32.xlu0 %v1119
        %v1121 = vpop.xlane.xlu0 %1120
        %v1122 = vsel %vm731, %v1104, -inf
        %1123 = vmax.xlane.f32.xlu0 %v1122
        %v1124 = vpop.xlane.xlu0 %1123
        %v1125 = vsel %vm731, %v1105, -inf
        %1126 = vmax.xlane.f32.xlu0 %v1125
        %v1127 = vpop.xlane.xlu0 %1126
        %v1128 = vsel %vm731, %v1106, -inf
        %1129 = vmax.xlane.f32.xlu0 %v1128
        %v1130 = vpop.xlane.xlu0 %1129
        %v1131 = vsub.f32 %v1099, %v1109
        %v1132 = vsub.f32 %v1100, %v1112
        %v1133 = vsub.f32 %v1101, %v1115
        %v1134 = vsub.f32 %v1102, %v1118
        %v1135 = vsub.f32 %v1103, %v1121
        %v1136 = vsub.f32 %v1104, %v1124
        %v1137 = vsub.f32 %v1105, %v1127
        %v1138 = vsub.f32 %v1106, %v1130
        %v1139 = vmul.f32 %v1131, 1.442695
        %v1140 = vpow.pop %v1139
        %v1141 = vmul.f32 %v1132, 1.442695
        %v1142 = vpow.pop %v1141
        %v1143 = vmul.f32 %v1133, 1.442695
        %v1144 = vpow.pop %v1143
        %v1145 = vmul.f32 %v1134, 1.442695
        %v1146 = vpow.pop %v1145
        %v1147 = vmul.f32 %v1135, 1.442695
        %v1148 = vpow.pop %v1147
        %v1149 = vmul.f32 %v1136, 1.442695
        %v1150 = vpow.pop %v1149
        %v1151 = vmul.f32 %v1137, 1.442695
        %v1152 = vpow.pop %v1151
        %v1153 = vmul.f32 %v1138, 1.442695
        %v1154 = vpow.pop %v1153
        %v1155 = vsel %vm731, %v1140, 0.0
        %1156 = vadd.xlane.f32.xlu0 %v1155
        %v1157 = vpop.xlane.xlu0 %1156
        %v1158 = vsel %vm731, %v1142, 0.0
        %1159 = vadd.xlane.f32.xlu0 %v1158
        %v1160 = vpop.xlane.xlu0 %1159
        %v1161 = vsel %vm731, %v1144, 0.0
        %1162 = vadd.xlane.f32.xlu0 %v1161
        %v1163 = vpop.xlane.xlu0 %1162
        %v1164 = vsel %vm731, %v1146, 0.0
        %1165 = vadd.xlane.f32.xlu0 %v1164
        %v1166 = vpop.xlane.xlu0 %1165
        %v1167 = vsel %vm731, %v1148, 0.0
        %1168 = vadd.xlane.f32.xlu0 %v1167
        %v1169 = vpop.xlane.xlu0 %1168
        %v1170 = vsel %vm731, %v1150, 0.0
        %1171 = vadd.xlane.f32.xlu0 %v1170
        %v1172 = vpop.xlane.xlu0 %1171
        %v1173 = vsel %vm731, %v1152, 0.0
        %1174 = vadd.xlane.f32.xlu0 %v1173
        %v1175 = vpop.xlane.xlu0 %1174
        %v1176 = vsel %vm731, %v1154, 0.0
        %1177 = vadd.xlane.f32.xlu0 %v1176
        %v1178 = vpop.xlane.xlu0 %1177
        %v1179 = vrcp.pop %v1157
        %v1180 = vrcp.pop %v1160
        %v1181 = vrcp.pop %v1163
        %v1182 = vrcp.pop %v1166
        %v1183 = vrcp.pop %v1169
        %v1184 = vrcp.pop %v1172
        %v1185 = vrcp.pop %v1175
        %v1186 = vrcp.pop %v1178
        %v1187 = vmul.f32 %v1140, %v1179
        %v1188 = vmul.f32 %v1142, %v1180
        %v1189 = vmul.f32 %v1144, %v1181
        %v1190 = vmul.f32 %v1146, %v1182
        %v1191 = vmul.f32 %v1148, %v1183
        %v1192 = vmul.f32 %v1150, %v1184
        %v1193 = vmul.f32 %v1152, %v1185
        %v1194 = vmul.f32 %v1154, %v1186
        %v1195 = vpack.c.bf16 %v1187, %v1187
        %v1196 = vpack.c.bf16 %v1188, %v1188
        %v1197 = vpack.c.bf16 %v1189, %v1189
        %v1198 = vpack.c.bf16 %v1190, %v1190
        %v1199 = vpack.c.bf16 %v1191, %v1191
        %v1200 = vpack.c.bf16 %v1192, %v1192
        %v1201 = vpack.c.bf16 %v1193, %v1193
        %v1202 = vpack.c.bf16 %v1194, %v1194
        %1204 = vrot.lane.b32.xlu0 %v724, 80
        %v1205 = vpop.permute.xlu0 %1204
        %v1207 = vsel %vm731, %v1195, 0
        %vm1209 = vcmask 1043456
        %v1211 = vsel %vm1209, %v1205, 0
        %1213 = vmatprep.subr.bf16.mxu0 0
        %1214 = vmatpush1.bf16.msra.mxu0 %v1211
        %1215 = vmatprep.subr.bf16.mxu0 0
        %1216 = vmatpush1.bf16.msra.mxu0 0
        %1217 = vmatprep.subr.bf16.mxu0 0
        %1218 = vmatpush1.bf16.msra.mxu0 0
        %1219 = vmatprep.subr.bf16.mxu0 0
        %1220 = vmatpush1.bf16.msra.mxu0 0
        %1221 = vmatprep.subr.bf16.mxu0 0
        %1222 = vmatpush1.bf16.msra.mxu0 0
        %1223 = vmatprep.subr.bf16.mxu0 0
        %1224 = vmatpush1.bf16.msra.mxu0 0
        %1225 = vmatprep.subr.bf16.mxu0 0
        %1226 = vmatpush1.bf16.msra.mxu0 0
        %1227 = vmatprep.subr.bf16.mxu0 0
        %1228 = vmatpush1.bf16.msra.mxu0 0
        %1229 = vmatprep.subr.bf16.mxu0 0
        %1230 = vmatpush1.bf16.msra.mxu0 0
        %1231 = vmatprep.subr.bf16.mxu0 0
        %1232 = vmatpush1.bf16.msra.mxu0 0
        %1233 = vmatprep.subr.bf16.mxu0 0
        %1234 = vmatpush1.bf16.msra.mxu0 0
        %1235 = vmatprep.subr.bf16.mxu0 0
        %1236 = vmatpush1.bf16.msra.mxu0 0
        %1237 = vmatprep.subr.bf16.mxu0 0
        %1238 = vmatpush1.bf16.msra.mxu0 0
        %1239 = vmatprep.subr.bf16.mxu0 0
        %1240 = vmatpush1.bf16.msra.mxu0 0
        %1241 = vmatprep.subr.bf16.mxu0 0
        %1242 = vmatpush1.bf16.msra.mxu0 0
        %1243 = vmatprep.subr.bf16.mxu0 0
        %1244 = vmatpush1.bf16.msra.mxu0 0
        %1245 = vmatprep.mubr.bf16.mxu0 0
        %1246 = vmatmul.mubr.bf16.gmra.mrb[0].mxu0 %v1207
        %v1247 = vpop.f32.mrb[0].mxu0
        %v1248 = vadd.f32 0.0, %v1247
        %v1249 = vpop.f32.mrb[0].mxu0
        %v1250 = vpop.f32.mrb[0].mxu0
        %v1251 = vpop.f32.mrb[0].mxu0
        %1252 = vdwg.mxu0
        %1254 = vrot.lane.b32.xlu0 %v725, 80
        %v1255 = vpop.permute.xlu0 %1254
        %v1257 = vsel %vm731, %v1196, 0
        %v1260 = vsel %vm1209, %v1255, 0
        %1262 = vmatprep.subr.bf16.mxu0 0
        %1263 = vmatpush1.bf16.msra.mxu0 %v1260
        %1264 = vmatprep.subr.bf16.mxu0 0
        %1265 = vmatpush1.bf16.msra.mxu0 0
        %1266 = vmatprep.subr.bf16.mxu0 0
        %1267 = vmatpush1.bf16.msra.mxu0 0
        %1268 = vmatprep.subr.bf16.mxu0 0
        %1269 = vmatpush1.bf16.msra.mxu0 0
        %1270 = vmatprep.subr.bf16.mxu0 0
        %1271 = vmatpush1.bf16.msra.mxu0 0
        %1272 = vmatprep.subr.bf16.mxu0 0
        %1273 = vmatpush1.bf16.msra.mxu0 0
        %1274 = vmatprep.subr.bf16.mxu0 0
        %1275 = vmatpush1.bf16.msra.mxu0 0
        %1276 = vmatprep.subr.bf16.mxu0 0
        %1277 = vmatpush1.bf16.msra.mxu0 0
        %1278 = vmatprep.subr.bf16.mxu0 0
        %1279 = vmatpush1.bf16.msra.mxu0 0
        %1280 = vmatprep.subr.bf16.mxu0 0
        %1281 = vmatpush1.bf16.msra.mxu0 0
        %1282 = vmatprep.subr.bf16.mxu0 0
        %1283 = vmatpush1.bf16.msra.mxu0 0
        %1284 = vmatprep.subr.bf16.mxu0 0
        %1285 = vmatpush1.bf16.msra.mxu0 0
        %1286 = vmatprep.subr.bf16.mxu0 0
        %1287 = vmatpush1.bf16.msra.mxu0 0
        %1288 = vmatprep.subr.bf16.mxu0 0
        %1289 = vmatpush1.bf16.msra.mxu0 0
        %1290 = vmatprep.subr.bf16.mxu0 0
        %1291 = vmatpush1.bf16.msra.mxu0 0
        %1292 = vmatprep.subr.bf16.mxu0 0
        %1293 = vmatpush1.bf16.msra.mxu0 0
        %1294 = vmatprep.mubr.bf16.mxu0 0
        %1295 = vmatmul.mubr.bf16.gmra.mrb[0].mxu0 %v1257
        %v1296 = vpop.f32.mrb[0].mxu0
        %v1297 = vadd.f32 0.0, %v1296
        %v1298 = vpop.f32.mrb[0].mxu0
        %v1299 = vpop.f32.mrb[0].mxu0
        %v1300 = vpop.f32.mrb[0].mxu0
        %1301 = vdwg.mxu0
        %v1303 = vsel %vm731, %v1197, 0
        %1305 = vmatprep.subr.bf16.mxu0 0
        %1306 = vmatpush1.bf16.msra.mxu0 %v1211
        %1307 = vmatprep.subr.bf16.mxu0 0
        %1308 = vmatpush1.bf16.msra.mxu0 0
        %1309 = vmatprep.subr.bf16.mxu0 0
        %1310 = vmatpush1.bf16.msra.mxu0 0
        %1311 = vmatprep.subr.bf16.mxu0 0
        %1312 = vmatpush1.bf16.msra.mxu0 0
        %1313 = vmatprep.subr.bf16.mxu0 0
        %1314 = vmatpush1.bf16.msra.mxu0 0
        %1315 = vmatprep.subr.bf16.mxu0 0
        %1316 = vmatpush1.bf16.msra.mxu0 0
        %1317 = vmatprep.subr.bf16.mxu0 0
        %1318 = vmatpush1.bf16.msra.mxu0 0
        %1319 = vmatprep.subr.bf16.mxu0 0
        %1320 = vmatpush1.bf16.msra.mxu0 0
        %1321 = vmatprep.subr.bf16.mxu0 0
        %1322 = vmatpush1.bf16.msra.mxu0 0
        %1323 = vmatprep.subr.bf16.mxu0 0
        %1324 = vmatpush1.bf16.msra.mxu0 0
        %1325 = vmatprep.subr.bf16.mxu0 0
        %1326 = vmatpush1.bf16.msra.mxu0 0
        %1327 = vmatprep.subr.bf16.mxu0 0
        %1328 = vmatpush1.bf16.msra.mxu0 0
        %1329 = vmatprep.subr.bf16.mxu0 0
        %1330 = vmatpush1.bf16.msra.mxu0 0
        %1331 = vmatprep.subr.bf16.mxu0 0
        %1332 = vmatpush1.bf16.msra.mxu0 0
        %1333 = vmatprep.subr.bf16.mxu0 0
        %1334 = vmatpush1.bf16.msra.mxu0 0
        %1335 = vmatprep.subr.bf16.mxu0 0
        %1336 = vmatpush1.bf16.msra.mxu0 0
        %1337 = vmatprep.mubr.bf16.mxu0 0
        %1338 = vmatmul.mubr.bf16.gmra.mrb[0].mxu0 %v1303
        %v1339 = vpop.f32.mrb[0].mxu0
        %v1340 = vadd.f32 0.0, %v1339
        %v1341 = vpop.f32.mrb[0].mxu0
        %v1342 = vpop.f32.mrb[0].mxu0
        %v1343 = vpop.f32.mrb[0].mxu0
        %1344 = vdwg.mxu0
        %v1346 = vsel %vm731, %v1198, 0
        %1348 = vmatprep.subr.bf16.mxu0 0
        %1349 = vmatpush1.bf16.msra.mxu0 %v1260
        %1350 = vmatprep.subr.bf16.mxu0 0
        %1351 = vmatpush1.bf16.msra.mxu0 0
        %1352 = vmatprep.subr.bf16.mxu0 0
        %1353 = vmatpush1.bf16.msra.mxu0 0
        %1354 = vmatprep.subr.bf16.mxu0 0
        %1355 = vmatpush1.bf16.msra.mxu0 0
        %1356 = vmatprep.subr.bf16.mxu0 0
        %1357 = vmatpush1.bf16.msra.mxu0 0
        %1358 = vmatprep.subr.bf16.mxu0 0
        %1359 = vmatpush1.bf16.msra.mxu0 0
        %1360 = vmatprep.subr.bf16.mxu0 0
        %1361 = vmatpush1.bf16.msra.mxu0 0
        %1362 = vmatprep.subr.bf16.mxu0 0
        %1363 = vmatpush1.bf16.msra.mxu0 0
        %1364 = vmatprep.subr.bf16.mxu0 0
        %1365 = vmatpush1.bf16.msra.mxu0 0
        %1366 = vmatprep.subr.bf16.mxu0 0
        %1367 = vmatpush1.bf16.msra.mxu0 0
        %1368 = vmatprep.subr.bf16.mxu0 0
        %1369 = vmatpush1.bf16.msra.mxu0 0
        %1370 = vmatprep.subr.bf16.mxu0 0
        %1371 = vmatpush1.bf16.msra.mxu0 0
        %1372 = vmatprep.subr.bf16.mxu0 0
        %1373 = vmatpush1.bf16.msra.mxu0 0
        %1374 = vmatprep.subr.bf16.mxu0 0
        %1375 = vmatpush1.bf16.msra.mxu0 0
        %1376 = vmatprep.subr.bf16.mxu0 0
        %1377 = vmatpush1.bf16.msra.mxu0 0
        %1378 = vmatprep.subr.bf16.mxu0 0
        %1379 = vmatpush1.bf16.msra.mxu0 0
        %1380 = vmatprep.mubr.bf16.mxu0 0
        %1381 = vmatmul.mubr.bf16.gmra.mrb[0].mxu0 %v1346
        %v1382 = vpop.f32.mrb[0].mxu0
        %v1383 = vadd.f32 0.0, %v1382
        %v1384 = vpop.f32.mrb[0].mxu0
        %v1385 = vpop.f32.mrb[0].mxu0
        %v1386 = vpop.f32.mrb[0].mxu0
        %1387 = vdwg.mxu0
        %1389 = vrot.lane.b32.xlu0 %v726, 80
        %v1390 = vpop.permute.xlu0 %1389
        %v1392 = vsel %vm731, %v1199, 0
        %v1395 = vsel %vm1209, %v1390, 0
        %1397 = vmatprep.subr.bf16.mxu0 0
        %1398 = vmatpush1.bf16.msra.mxu0 %v1395
        %1399 = vmatprep.subr.bf16.mxu0 0
        %1400 = vmatpush1.bf16.msra.mxu0 0
        %1401 = vmatprep.subr.bf16.mxu0 0
        %1402 = vmatpush1.bf16.msra.mxu0 0
        %1403 = vmatprep.subr.bf16.mxu0 0
        %1404 = vmatpush1.bf16.msra.mxu0 0
        %1405 = vmatprep.subr.bf16.mxu0 0
        %1406 = vmatpush1.bf16.msra.mxu0 0
        %1407 = vmatprep.subr.bf16.mxu0 0
        %1408 = vmatpush1.bf16.msra.mxu0 0
        %1409 = vmatprep.subr.bf16.mxu0 0
        %1410 = vmatpush1.bf16.msra.mxu0 0
        %1411 = vmatprep.subr.bf16.mxu0 0
        %1412 = vmatpush1.bf16.msra.mxu0 0
        %1413 = vmatprep.subr.bf16.mxu0 0
        %1414 = vmatpush1.bf16.msra.mxu0 0
        %1415 = vmatprep.subr.bf16.mxu0 0
        %1416 = vmatpush1.bf16.msra.mxu0 0
        %1417 = vmatprep.subr.bf16.mxu0 0
        %1418 = vmatpush1.bf16.msra.mxu0 0
        %1419 = vmatprep.subr.bf16.mxu0 0
        %1420 = vmatpush1.bf16.msra.mxu0 0
        %1421 = vmatprep.subr.bf16.mxu0 0
        %1422 = vmatpush1.bf16.msra.mxu0 0
        %1423 = vmatprep.subr.bf16.mxu0 0
        %1424 = vmatpush1.bf16.msra.mxu0 0
        %1425 = vmatprep.subr.bf16.mxu0 0
        %1426 = vmatpush1.bf16.msra.mxu0 0
        %1427 = vmatprep.subr.bf16.mxu0 0
        %1428 = vmatpush1.bf16.msra.mxu0 0
        %1429 = vmatprep.mubr.bf16.mxu0 0
        %1430 = vmatmul.mubr.bf16.gmra.mrb[0].mxu0 %v1392
        %v1431 = vpop.f32.mrb[0].mxu0
        %v1432 = vadd.f32 0.0, %v1431
        %v1433 = vpop.f32.mrb[0].mxu0
        %v1434 = vpop.f32.mrb[0].mxu0
        %v1435 = vpop.f32.mrb[0].mxu0
        %1436 = vdwg.mxu0
        %1438 = vrot.lane.b32.xlu0 %v727, 80
        %v1439 = vpop.permute.xlu0 %1438
        %v1441 = vsel %vm731, %v1200, 0
        %v1444 = vsel %vm1209, %v1439, 0
        %1446 = vmatprep.subr.bf16.mxu0 0
        %1447 = vmatpush1.bf16.msra.mxu0 %v1444
        %1448 = vmatprep.subr.bf16.mxu0 0
        %1449 = vmatpush1.bf16.msra.mxu0 0
        %1450 = vmatprep.subr.bf16.mxu0 0
        %1451 = vmatpush1.bf16.msra.mxu0 0
        %1452 = vmatprep.subr.bf16.mxu0 0
        %1453 = vmatpush1.bf16.msra.mxu0 0
        %1454 = vmatprep.subr.bf16.mxu0 0
        %1455 = vmatpush1.bf16.msra.mxu0 0
        %1456 = vmatprep.subr.bf16.mxu0 0
        %1457 = vmatpush1.bf16.msra.mxu0 0
        %1458 = vmatprep.subr.bf16.mxu0 0
        %1459 = vmatpush1.bf16.msra.mxu0 0
        %1460 = vmatprep.subr.bf16.mxu0 0
        %1461 = vmatpush1.bf16.msra.mxu0 0
        %1462 = vmatprep.subr.bf16.mxu0 0
        %1463 = vmatpush1.bf16.msra.mxu0 0
        %1464 = vmatprep.subr.bf16.mxu0 0
        %1465 = vmatpush1.bf16.msra.mxu0 0
        %1466 = vmatprep.subr.bf16.mxu0 0
        %1467 = vmatpush1.bf16.msra.mxu0 0
        %1468 = vmatprep.subr.bf16.mxu0 0
        %1469 = vmatpush1.bf16.msra.mxu0 0
        %1470 = vmatprep.subr.bf16.mxu0 0
        %1471 = vmatpush1.bf16.msra.mxu0 0
        %1472 = vmatprep.subr.bf16.mxu0 0
        %1473 = vmatpush1.bf16.msra.mxu0 0
        %1474 = vmatprep.subr.bf16.mxu0 0
        %1475 = vmatpush1.bf16.msra.mxu0 0
        %1476 = vmatprep.subr.bf16.mxu0 0
        %1477 = vmatpush1.bf16.msra.mxu0 0
        %1478 = vmatprep.mubr.bf16.mxu0 0
        %1479 = vmatmul.mubr.bf16.gmra.mrb[0].mxu0 %v1441
        %v1480 = vpop.f32.mrb[0].mxu0
        %v1481 = vadd.f32 0.0, %v1480
        %v1482 = vpop.f32.mrb[0].mxu0
        %v1483 = vpop.f32.mrb[0].mxu0
        %v1484 = vpop.f32.mrb[0].mxu0
        %1485 = vdwg.mxu0
        %v1487 = vsel %vm731, %v1201, 0
        %1489 = vmatprep.subr.bf16.mxu0 0
        %1490 = vmatpush1.bf16.msra.mxu0 %v1395
        %1491 = vmatprep.subr.bf16.mxu0 0
        %1492 = vmatpush1.bf16.msra.mxu0 0
        %1493 = vmatprep.subr.bf16.mxu0 0
        %1494 = vmatpush1.bf16.msra.mxu0 0
        %1495 = vmatprep.subr.bf16.mxu0 0
        %1496 = vmatpush1.bf16.msra.mxu0 0
        %1497 = vmatprep.subr.bf16.mxu0 0
        %1498 = vmatpush1.bf16.msra.mxu0 0
        %1499 = vmatprep.subr.bf16.mxu0 0
        %1500 = vmatpush1.bf16.msra.mxu0 0
        %1501 = vmatprep.subr.bf16.mxu0 0
        %1502 = vmatpush1.bf16.msra.mxu0 0
        %1503 = vmatprep.subr.bf16.mxu0 0
        %1504 = vmatpush1.bf16.msra.mxu0 0
        %1505 = vmatprep.subr.bf16.mxu0 0
        %1506 = vmatpush1.bf16.msra.mxu0 0
        %1507 = vmatprep.subr.bf16.mxu0 0
        %1508 = vmatpush1.bf16.msra.mxu0 0
        %1509 = vmatprep.subr.bf16.mxu0 0
        %1510 = vmatpush1.bf16.msra.mxu0 0
        %1511 = vmatprep.subr.bf16.mxu0 0
        %1512 = vmatpush1.bf16.msra.mxu0 0
        %1513 = vmatprep.subr.bf16.mxu0 0
        %1514 = vmatpush1.bf16.msra.mxu0 0
        %1515 = vmatprep.subr.bf16.mxu0 0
        %1516 = vmatpush1.bf16.msra.mxu0 0
        %1517 = vmatprep.subr.bf16.mxu0 0
        %1518 = vmatpush1.bf16.msra.mxu0 0
        %1519 = vmatprep.subr.bf16.mxu0 0
        %1520 = vmatpush1.bf16.msra.mxu0 0
        %1521 = vmatprep.mubr.bf16.mxu0 0
        %1522 = vmatmul.mubr.bf16.gmra.mrb[0].mxu0 %v1487
        %v1523 = vpop.f32.mrb[0].mxu0
        %v1524 = vadd.f32 0.0, %v1523
        %v1525 = vpop.f32.mrb[0].mxu0
        %v1526 = vpop.f32.mrb[0].mxu0
        %v1527 = vpop.f32.mrb[0].mxu0
        %1528 = vdwg.mxu0
        %v1530 = vsel %vm731, %v1202, 0
        %1532 = vmatprep.subr.bf16.mxu0 0
        %1533 = vmatpush1.bf16.msra.mxu0 %v1444
        %1534 = vmatprep.subr.bf16.mxu0 0
        %1535 = vmatpush1.bf16.msra.mxu0 0
        %1536 = vmatprep.subr.bf16.mxu0 0
        %1537 = vmatpush1.bf16.msra.mxu0 0
        %1538 = vmatprep.subr.bf16.mxu0 0
        %1539 = vmatpush1.bf16.msra.mxu0 0
        %1540 = vmatprep.subr.bf16.mxu0 0
        %1541 = vmatpush1.bf16.msra.mxu0 0
        %1542 = vmatprep.subr.bf16.mxu0 0
        %1543 = vmatpush1.bf16.msra.mxu0 0
        %1544 = vmatprep.subr.bf16.mxu0 0
        %1545 = vmatpush1.bf16.msra.mxu0 0
        %1546 = vmatprep.subr.bf16.mxu0 0
        %1547 = vmatpush1.bf16.msra.mxu0 0
        %1548 = vmatprep.subr.bf16.mxu0 0
        %1549 = vmatpush1.bf16.msra.mxu0 0
        %1550 = vmatprep.subr.bf16.mxu0 0
        %1551 = vmatpush1.bf16.msra.mxu0 0
        %1552 = vmatprep.subr.bf16.mxu0 0
        %1553 = vmatpush1.bf16.msra.mxu0 0
        %1554 = vmatprep.subr.bf16.mxu0 0
        %1555 = vmatpush1.bf16.msra.mxu0 0
        %1556 = vmatprep.subr.bf16.mxu0 0
        %1557 = vmatpush1.bf16.msra.mxu0 0
        %1558 = vmatprep.subr.bf16.mxu0 0
        %1559 = vmatpush1.bf16.msra.mxu0 0
        %1560 = vmatprep.subr.bf16.mxu0 0
        %1561 = vmatpush1.bf16.msra.mxu0 0
        %1562 = vmatprep.subr.bf16.mxu0 0
        %1563 = vmatpush1.bf16.msra.mxu0 0
        %1564 = vmatprep.mubr.bf16.mxu0 0
        %1565 = vmatmul.mubr.bf16.gmra.mrb[0].mxu0 %v1530
        %v1566 = vpop.f32.mrb[0].mxu0
        %v1567 = vadd.f32 0.0, %v1566
        %v1568 = vpop.f32.mrb[0].mxu0
        %v1569 = vpop.f32.mrb[0].mxu0
        %v1570 = vpop.f32.mrb[0].mxu0
        %1571 = vdwg.mxu0
        %v1572 = vld [vmem:[%s455] sm:$0xf]
        %v1573 = vld [vmem:[%s455 + $0x4] sm:$0xf]
        %v1574 = vld [vmem:[%s455 + $0x8] sm:$0xf]
        %v1575 = vld [vmem:[%s455 + $0xc] sm:$0xf]
        %v1576 = vpack.c.bf16 %v1297, %v1248
        %v1577 = vpack.c.bf16 %v1383, %v1340
        %v1579 = vsel %vm731, %v1577, 0
        %v1582 = vsel %vm1209, %v1573, 0
        %1584 = vmatprep.subr.bf16.mxu0 0
        %1585 = vmatpush1.bf16.msra.mxu0 %v1582
        %1586 = vmatprep.subr.bf16.mxu0 0
        %1587 = vmatpush1.bf16.msra.mxu0 0
        %1588 = vmatprep.subr.bf16.mxu0 0
        %1589 = vmatpush1.bf16.msra.mxu0 0
        %1590 = vmatprep.subr.bf16.mxu0 0
        %1591 = vmatpush1.bf16.msra.mxu0 0
        %1592 = vmatprep.subr.bf16.mxu0 0
        %1593 = vmatpush1.bf16.msra.mxu0 0
        %1594 = vmatprep.subr.bf16.mxu0 0
        %1595 = vmatpush1.bf16.msra.mxu0 0
        %1596 = vmatprep.subr.bf16.mxu0 0
        %1597 = vmatpush1.bf16.msra.mxu0 0
        %1598 = vmatprep.subr.bf16.mxu0 0
        %1599 = vmatpush1.bf16.msra.mxu0 0
        %1600 = vmatprep.subr.bf16.mxu0 0
        %1601 = vmatpush1.bf16.msra.mxu0 0
        %1602 = vmatprep.subr.bf16.mxu0 0
        %1603 = vmatpush1.bf16.msra.mxu0 0
        %1604 = vmatprep.subr.bf16.mxu0 0
        %1605 = vmatpush1.bf16.msra.mxu0 0
        %1606 = vmatprep.subr.bf16.mxu0 0
        %1607 = vmatpush1.bf16.msra.mxu0 0
        %1608 = vmatprep.subr.bf16.mxu0 0
        %1609 = vmatpush1.bf16.msra.mxu0 0
        %1610 = vmatprep.subr.bf16.mxu0 0
        %1611 = vmatpush1.bf16.msra.mxu0 0
        %1612 = vmatprep.subr.bf16.mxu0 0
        %1613 = vmatpush1.bf16.msra.mxu0 0
        %1614 = vmatprep.subr.bf16.mxu0 0
        %1615 = vmatpush1.bf16.msra.mxu0 0
        %1616 = vmatprep.mubr.bf16.mxu0 0
        %1617 = vmatmul.mubr.bf16.gmra.mrb[0].mxu0 %v1579
        %v1618 = vpop.f32.mrb[0].mxu0
        %v1619 = vadd.f32 0.0, %v1618
        %v1620 = vpop.f32.mrb[0].mxu0
        %v1621 = vpop.f32.mrb[0].mxu0
        %v1622 = vadd.f32 0.0, %v1621
        %v1623 = vpop.f32.mrb[0].mxu0
        %1624 = vdwg.mxu0
        %v1626 = vsel %vm731, %v1576, 0
        %v1629 = vsel %vm1209, %v1572, 0
        %1631 = vmatprep.subr.bf16.mxu0 0
        %1632 = vmatpush1.bf16.msra.mxu0 %v1629
        %1633 = vmatprep.subr.bf16.mxu0 0
        %1634 = vmatpush1.bf16.msra.mxu0 0
        %1635 = vmatprep.subr.bf16.mxu0 0
        %1636 = vmatpush1.bf16.msra.mxu0 0
        %1637 = vmatprep.subr.bf16.mxu0 0
        %1638 = vmatpush1.bf16.msra.mxu0 0
        %1639 = vmatprep.subr.bf16.mxu0 0
        %1640 = vmatpush1.bf16.msra.mxu0 0
        %1641 = vmatprep.subr.bf16.mxu0 0
        %1642 = vmatpush1.bf16.msra.mxu0 0
        %1643 = vmatprep.subr.bf16.mxu0 0
        %1644 = vmatpush1.bf16.msra.mxu0 0
        %1645 = vmatprep.subr.bf16.mxu0 0
        %1646 = vmatpush1.bf16.msra.mxu0 0
        %1647 = vmatprep.subr.bf16.mxu0 0
        %1648 = vmatpush1.bf16.msra.mxu0 0
        %1649 = vmatprep.subr.bf16.mxu0 0
        %1650 = vmatpush1.bf16.msra.mxu0 0
        %1651 = vmatprep.subr.bf16.mxu0 0
        %1652 = vmatpush1.bf16.msra.mxu0 0
        %1653 = vmatprep.subr.bf16.mxu0 0
        %1654 = vmatpush1.bf16.msra.mxu0 0
        %1655 = vmatprep.subr.bf16.mxu0 0
        %1656 = vmatpush1.bf16.msra.mxu0 0
        %1657 = vmatprep.subr.bf16.mxu0 0
        %1658 = vmatpush1.bf16.msra.mxu0 0
        %1659 = vmatprep.subr.bf16.mxu0 0
        %1660 = vmatpush1.bf16.msra.mxu0 0
        %1661 = vmatprep.subr.bf16.mxu0 0
        %1662 = vmatpush1.bf16.msra.mxu0 0
        %1663 = vmatprep.mubr.bf16.mxu0 0
        %1664 = vmatmul.mubr.bf16.gmra.mrb[0].mxu0 %v1626
        %v1665 = vpop.f32.mrb[0].mxu0
        %v1666 = vadd.f32 %v1619, %v1665
        %v1667 = vpop.f32.mrb[0].mxu0
        %v1668 = vpop.f32.mrb[0].mxu0
        %v1669 = vadd.f32 %v1622, %v1668
        %v1670 = vpop.f32.mrb[0].mxu0
        %1671 = vdwg.mxu0
        %v1672 = vpack.c.bf16 %v1481, %v1432
        %v1674 = vsel %vm731, %v1672, 0
        %v1677 = vsel %vm1209, %v1574, 0
        %1679 = vmatprep.subr.bf16.mxu0 0
        %1680 = vmatpush1.bf16.msra.mxu0 %v1677
        %1681 = vmatprep.subr.bf16.mxu0 0
        %1682 = vmatpush1.bf16.msra.mxu0 0
        %1683 = vmatprep.subr.bf16.mxu0 0
        %1684 = vmatpush1.bf16.msra.mxu0 0
        %1685 = vmatprep.subr.bf16.mxu0 0
        %1686 = vmatpush1.bf16.msra.mxu0 0
        %1687 = vmatprep.subr.bf16.mxu0 0
        %1688 = vmatpush1.bf16.msra.mxu0 0
        %1689 = vmatprep.subr.bf16.mxu0 0
        %1690 = vmatpush1.bf16.msra.mxu0 0
        %1691 = vmatprep.subr.bf16.mxu0 0
        %1692 = vmatpush1.bf16.msra.mxu0 0
        %1693 = vmatprep.subr.bf16.mxu0 0
        %1694 = vmatpush1.bf16.msra.mxu0 0
        %1695 = vmatprep.subr.bf16.mxu0 0
        %1696 = vmatpush1.bf16.msra.mxu0 0
        %1697 = vmatprep.subr.bf16.mxu0 0
        %1698 = vmatpush1.bf16.msra.mxu0 0
        %1699 = vmatprep.subr.bf16.mxu0 0
        %1700 = vmatpush1.bf16.msra.mxu0 0
        %1701 = vmatprep.subr.bf16.mxu0 0
        %1702 = vmatpush1.bf16.msra.mxu0 0
        %1703 = vmatprep.subr.bf16.mxu0 0
        %1704 = vmatpush1.bf16.msra.mxu0 0
        %1705 = vmatprep.subr.bf16.mxu0 0
        %1706 = vmatpush1.bf16.msra.mxu0 0
        %1707 = vmatprep.subr.bf16.mxu0 0
        %1708 = vmatpush1.bf16.msra.mxu0 0
        %1709 = vmatprep.subr.bf16.mxu0 0
        %1710 = vmatpush1.bf16.msra.mxu0 0
        %1711 = vmatprep.mubr.bf16.mxu0 0
        %1712 = vmatmul.mubr.bf16.gmra.mrb[0].mxu0 %v1674
        %v1713 = vpop.f32.mrb[0].mxu0
        %v1714 = vadd.f32 0.0, %v1713
        %v1715 = vpop.f32.mrb[0].mxu0
        %v1716 = vpop.f32.mrb[0].mxu0
        %v1717 = vadd.f32 0.0, %v1716
        %v1718 = vpop.f32.mrb[0].mxu0
        %1719 = vdwg.mxu0
        %v1720 = vadd.f32 %v1666, %v1714
        %v1721 = vadd.f32 %v1669, %v1717
        %v1722 = vpack.c.bf16 %v1567, %v1524
        %v1724 = vsel %vm731, %v1722, 0
        %v1727 = vsel %vm1209, %v1575, 0
        %1729 = vmatprep.subr.bf16.mxu0 0
        %1730 = vmatpush1.bf16.msra.mxu0 %v1727
        %1731 = vmatprep.subr.bf16.mxu0 0
        %1732 = vmatpush1.bf16.msra.mxu0 0
        %1733 = vmatprep.subr.bf16.mxu0 0
        %1734 = vmatpush1.bf16.msra.mxu0 0
        %1735 = vmatprep.subr.bf16.mxu0 0
        %1736 = vmatpush1.bf16.msra.mxu0 0
        %1737 = vmatprep.subr.bf16.mxu0 0
        %1738 = vmatpush1.bf16.msra.mxu0 0
        %1739 = vmatprep.subr.bf16.mxu0 0
        %1740 = vmatpush1.bf16.msra.mxu0 0
        %1741 = vmatprep.subr.bf16.mxu0 0
        %1742 = vmatpush1.bf16.msra.mxu0 0
        %1743 = vmatprep.subr.bf16.mxu0 0
        %1744 = vmatpush1.bf16.msra.mxu0 0
        %1745 = vmatprep.subr.bf16.mxu0 0
        %1746 = vmatpush1.bf16.msra.mxu0 0
        %1747 = vmatprep.subr.bf16.mxu0 0
        %1748 = vmatpush1.bf16.msra.mxu0 0
        %1749 = vmatprep.subr.bf16.mxu0 0
        %1750 = vmatpush1.bf16.msra.mxu0 0
        %1751 = vmatprep.subr.bf16.mxu0 0
        %1752 = vmatpush1.bf16.msra.mxu0 0
        %1753 = vmatprep.subr.bf16.mxu0 0
        %1754 = vmatpush1.bf16.msra.mxu0 0
        %1755 = vmatprep.subr.bf16.mxu0 0
        %1756 = vmatpush1.bf16.msra.mxu0 0
        %1757 = vmatprep.subr.bf16.mxu0 0
        %1758 = vmatpush1.bf16.msra.mxu0 0
        %1759 = vmatprep.subr.bf16.mxu0 0
        %1760 = vmatpush1.bf16.msra.mxu0 0
        %1761 = vmatprep.mubr.bf16.mxu0 0
        %1762 = vmatmul.mubr.bf16.gmra.mrb[0].mxu0 %v1724
        %v1763 = vpop.f32.mrb[0].mxu0
        %v1764 = vadd.f32 0.0, %v1763
        %v1765 = vpop.f32.mrb[0].mxu0
        %v1766 = vpop.f32.mrb[0].mxu0
        %v1767 = vadd.f32 0.0, %v1766
        %v1768 = vpop.f32.mrb[0].mxu0
        %1769 = vdwg.mxu0
        %v1770 = vadd.f32 %v1720, %v1764
        %v1771 = vadd.f32 %v1721, %v1767
        %v1772 = vadd.f32 %v484, %v1770
        %v1773 = vadd.f32 %v485, %v1771
        %v1774 = vld [vmem:[%s458] sm:$0x1]
        %v1775 = vmul.f32 %v1772, %v1772
        %v1776 = vmul.f32 %v1773, %v1773
        %v1777 = vsel %vm494, %v1775, 0.0
        %1778 = vadd.xlane.f32.xlu0 %v1777
        %v1779 = vpop.xlane.xlu0 %1778
        %v1780 = vsel %vm494, %v1776, 0.0
        %1781 = vadd.xlane.f32.xlu0 %v1780
        %v1782 = vpop.xlane.xlu0 %1781
        %v1783 = vmul.f32 %v1779, %v501
        %v1784 = vmul.f32 %v1782, %v501
        %v1785 = vadd.f32 %v1783, 1e-06
        %v1786 = vadd.f32 %v1784, 1e-06
        %v1787 = vrsqrt.pop %v1785
        %v1788 = vrsqrt.pop %v1786
        %v1789 = vmul.f32 %v1772, %v1787
        %v1790 = vmul.f32 %v1773, %v1788
        %v1792 = vlaneseq
        %v1793 = vshrl.u32 %v1792, 7
        %v1794 = vsub.s32 0, %v1793
        %v1795 = vrot.slane %v1774, %v1794
        %v1797 = vmul.f32 %v1789, %v1795
        %v1798 = vmul.f32 %v1790, %v1795
        %v1799 = vpack.c.bf16 %v1798, %v1797
        %v1800 = vld [vmem:[%s463] sm:$0xf]
        %v1801 = vld [vmem:[%s463 + $0x4] sm:$0xf]
        %v1802 = vld [vmem:[%s463 + $0x8] sm:$0xf]
        %v1803 = vld [vmem:[%s463 + $0xc] sm:$0xf]
        %v1808 = vunpack.c.l.b16 %v1800
        %v1809 = vunpack.c.l.b16 %v1801
        %v1810 = vunpack.c.l.b16 %v1802
        %v1811 = vunpack.c.l.b16 %v1803
        %v1812 = vpack.c.b16 %v1809, %v1808
        %v1813 = vpack.c.b16 %v1811, %v1810
        %v1817 = vsel %vm494, %v1799, 0
        %1819 = vmatprep.subr.bf16.mxu0 0
        %1820 = vmatpush1.bf16.msra.mxu0 %v1812
        %1821 = vmatprep.subr.bf16.mxu0 0
        %1822 = vmatpush1.bf16.msra.mxu0 %v1813
        %1823 = vmatprep.subr.bf16.mxu0 0
        %1824 = vmatpush1.bf16.msra.mxu0 0
        %1825 = vmatprep.subr.bf16.mxu0 0
        %1826 = vmatpush1.bf16.msra.mxu0 0
        %1827 = vmatprep.subr.bf16.mxu0 0
        %1828 = vmatpush1.bf16.msra.mxu0 0
        %1829 = vmatprep.subr.bf16.mxu0 0
        %1830 = vmatpush1.bf16.msra.mxu0 0
        %1831 = vmatprep.subr.bf16.mxu0 0
        %1832 = vmatpush1.bf16.msra.mxu0 0
        %1833 = vmatprep.subr.bf16.mxu0 0
        %1834 = vmatpush1.bf16.msra.mxu0 0
        %1835 = vmatprep.subr.bf16.mxu0 0
        %1836 = vmatpush1.bf16.msra.mxu0 0
        %1837 = vmatprep.subr.bf16.mxu0 0
        %1838 = vmatpush1.bf16.msra.mxu0 0
        %1839 = vmatprep.subr.bf16.mxu0 0
        %1840 = vmatpush1.bf16.msra.mxu0 0
        %1841 = vmatprep.subr.bf16.mxu0 0
        %1842 = vmatpush1.bf16.msra.mxu0 0
        %1843 = vmatprep.subr.bf16.mxu0 0
        %1844 = vmatpush1.bf16.msra.mxu0 0
        %1845 = vmatprep.subr.bf16.mxu0 0
        %1846 = vmatpush1.bf16.msra.mxu0 0
        %1847 = vmatprep.subr.bf16.mxu0 0
        %1848 = vmatpush1.bf16.msra.mxu0 0
        %1849 = vmatprep.subr.bf16.mxu0 0
        %1850 = vmatpush1.bf16.msra.mxu0 0
        %1851 = vmatprep.mubr.bf16.mxu0 0
        %1852 = vmatmul.mubr.bf16.gmra.mrb[0].mxu0 %v1817
        %v1853 = vpop.f32.mrb[0].mxu0
        %v1854 = vadd.f32 0.0, %v1853
        %v1855 = vpop.f32.mrb[0].mxu0
        %v1856 = vpop.f32.mrb[0].mxu0
        %v1857 = vadd.f32 0.0, %v1856
        %v1858 = vpop.f32.mrb[0].mxu0
        %1859 = vdwg.mxu0
        %v1860 = vxor.u32 %v1854, 2147483648
        %v1861 = vxor.u32 %v1857, 2147483648
        %v1862 = vmul.f32 %v1860, 1.442695
        %v1863 = vpow.pop %v1862
        %v1864 = vmul.f32 %v1861, 1.442695
        %v1865 = vpow.pop %v1864
        %v1866 = vadd.f32 %v1863, 1.0
        %v1867 = vadd.f32 %v1865, 1.0
        %v1868 = vrcp.pop %v1866
        %v1869 = vmul.f32 1.0, %v1868
        %v1870 = vrcp.pop %v1867
        %v1871 = vmul.f32 1.0, %v1870
        %v1872 = vmul.f32 %v1854, %v1869
        %v1873 = vmul.f32 %v1857, %v1871
        %1876 = vrot.lane.b32.xlu0 %v1854, 64
        %v1877 = vpop.permute.xlu0 %1876
        %1878 = vrot.lane.b32.xlu0 %v1857, 64
        %v1879 = vpop.permute.xlu0 %1878
        %v1882 = vmul.f32 %v1872, %v1877
        %v1883 = vmul.f32 %v1873, %v1879
        %v1884 = vpack.c.bf16 %v1883, %v1882
        %v1885 = vld [vmem:[%s468] sm:$0xf]
        %v1886 = vld [vmem:[%s468 + $0x4] sm:$0xf]
        %v1887 = vld [vmem:[%s468 + $0x8] sm:$0xf]
        %v1888 = vld [vmem:[%s468 + $0xc] sm:$0xf]
        %v1889 = vld [vmem:[%s468 + $0x10] sm:$0xf]
        %v1890 = vld [vmem:[%s468 + $0x14] sm:$0xf]
        %v1891 = vld [vmem:[%s468 + $0x18] sm:$0xf]
        %v1892 = vld [vmem:[%s468 + $0x1c] sm:$0xf]
        %v1901 = vunpack.c.l.b16 %v1885
        %v1902 = vunpack.c.l.b16 %v1886
        %v1903 = vunpack.c.l.b16 %v1887
        %v1904 = vunpack.c.l.b16 %v1888
        %v1905 = vunpack.c.l.b16 %v1889
        %v1906 = vunpack.c.l.b16 %v1890
        %v1907 = vunpack.c.l.b16 %v1891
        %v1908 = vunpack.c.l.b16 %v1892
        %v1909 = vpack.c.b16 %v1902, %v1901
        %v1910 = vpack.c.b16 %v1904, %v1903
        %v1911 = vpack.c.b16 %v1906, %v1905
        %v1912 = vpack.c.b16 %v1908, %v1907
        %vm1917 = vcmask 523264
        %v1919 = vsel %vm1917, %v1884, 0
        %1921 = vmatprep.subr.bf16.mxu0 0
        %1922 = vmatpush1.bf16.msra.mxu0 %v1909
        %1923 = vmatprep.subr.bf16.mxu0 0
        %1924 = vmatpush1.bf16.msra.mxu0 %v1910
        %1925 = vmatprep.subr.bf16.mxu0 0
        %1926 = vmatpush1.bf16.msra.mxu0 %v1911
        %1927 = vmatprep.subr.bf16.mxu0 0
        %1928 = vmatpush1.bf16.msra.mxu0 %v1912
        %1929 = vmatprep.subr.bf16.mxu0 0
        %1930 = vmatpush1.bf16.msra.mxu0 0
        %1931 = vmatprep.subr.bf16.mxu0 0
        %1932 = vmatpush1.bf16.msra.mxu0 0
        %1933 = vmatprep.subr.bf16.mxu0 0
        %1934 = vmatpush1.bf16.msra.mxu0 0
        %1935 = vmatprep.subr.bf16.mxu0 0
        %1936 = vmatpush1.bf16.msra.mxu0 0
        %1937 = vmatprep.subr.bf16.mxu0 0
        %1938 = vmatpush1.bf16.msra.mxu0 0
        %1939 = vmatprep.subr.bf16.mxu0 0
        %1940 = vmatpush1.bf16.msra.mxu0 0
        %1941 = vmatprep.subr.bf16.mxu0 0
        %1942 = vmatpush1.bf16.msra.mxu0 0
        %1943 = vmatprep.subr.bf16.mxu0 0
        %1944 = vmatpush1.bf16.msra.mxu0 0
        %1945 = vmatprep.subr.bf16.mxu0 0
        %1946 = vmatpush1.bf16.msra.mxu0 0
        %1947 = vmatprep.subr.bf16.mxu0 0
        %1948 = vmatpush1.bf16.msra.mxu0 0
        %1949 = vmatprep.subr.bf16.mxu0 0
        %1950 = vmatpush1.bf16.msra.mxu0 0
        %1951 = vmatprep.subr.bf16.mxu0 0
        %1952 = vmatpush1.bf16.msra.mxu0 0
        %1953 = vmatprep.mubr.bf16.mxu0 0
        %1954 = vmatmul.mubr.bf16.gmra.mrb[0].mxu0 %v1919
        %v1955 = vpop.f32.mrb[0].mxu0
        %v1956 = vadd.f32 0.0, %v1955
        %v1957 = vpop.f32.mrb[0].mxu0
        %v1958 = vpop.f32.mrb[0].mxu0
        %v1959 = vadd.f32 0.0, %v1958
        %v1960 = vpop.f32.mrb[0].mxu0
        %1961 = vdwg.mxu0
        %v1962 = vadd.f32 %v1772, %v1956
        %v1963 = vadd.f32 %v1773, %v1959
        %1964 = vst.msk [vmem:[#allocation2] sm:$0xff] %vm494, %v1962
        %1965 = vst.msk [vmem:[#allocation2 + $0x8] sm:$0xff] %vm494, %v1963
        %p1966 = scmp.lt.s32.totalorder %s24, 1
        %s1967 = scalar_select %p1966, %s24, 1
        %s1968 = smul.addr %s1967, 2
        %s1969 = smul.addr %s1968, 4
        %s1970 = scalar_lea.vmem %s11, %s1969
        // Predicated region
        $region65: #{decoder_forward.1} parent=59 // pred_check
          %p1971 = pneg %p277
        $region66: #{decoder_forward.1} parent=59 // pred_check_branch
          %1973 = sbr.rel (%p1971) target = $region68
        $region67: #{decoder_forward.1} parent=59 // pred_region
          %s1975 = ssub.s32 256, 256
          %1976 = vsyncadd [#allocation3], %s1975
          %s1977 = sshll.u32 [#allocation2], 4
          %s1978 = int_to_ptr.vmem [resolvable:$true] %s1977
          %1983 = dma.vmem_to_hbm [thread:$0]  %s1978, 256, %s10, [#allocation3], 128, 128, 8
        $region68: #{decoder_forward.1} parent=59 // pred_fallthru
          _
        // Predicated region
        $region69: #{decoder_forward.1} parent=59 // pred_check
          %p1984 = pneg %p303
        $region70: #{decoder_forward.1} parent=59 // pred_check_branch
          %1986 = sbr.rel (%p1984) target = $region72
        $region71: #{decoder_forward.1} parent=59 // pred_region
          _
        $region72: #{decoder_forward.1} parent=59 // pred_fallthru
          _
        // Predicated region
        $region73: #{decoder_forward.1} parent=59 // pred_check
          %p1987 = pneg %p277
        $region74: #{decoder_forward.1} parent=59 // pred_check_branch
          %1989 = sbr.rel (%p1987) target = $region76
        $region75: #{decoder_forward.1} parent=59 // pred_region
          %1990 = dma.done [#allocation3], 256
        $region76: #{decoder_forward.1} parent=59 // pred_fallthru
          _
      $region60: #{decoder_forward.1} parent=5 // pred_fallthru
        _
      %p1991 = scmp.le.s32.totalorder 2, %s19
      // Predicated region
      $region77: #{decoder_forward.1} parent=5 // pred_check
        %p1992 = pneg %p1991
      $region78: #{decoder_forward.1} parent=5 // pred_check_branch
        %1994 = sbr.rel (%p1992) target = $region80
      $region79: #{decoder_forward.1} parent=5 // pred_region
        %s1995 = ssub.s32 %s19, 2
        // Predicated region
        $region81: #{decoder_forward.1} parent=79 // pred_check
          %p1996 = pneg %p309
        $region82: #{decoder_forward.1} parent=79 // pred_check_branch
          %1998 = sbr.rel (%p1996) target = $region84
        $region83: #{decoder_forward.1} parent=79 // pred_region
          %p1999 = scmp.lt.s32.totalorder %s25, 1
          %s2000 = scalar_select %p1999, %s25, 1
          %s2001 = smul.addr %s2000, 2
          %s2002 = smul.addr %s2001, 4
          %s2003 = scalar_lea.vmem %s11, %s2002
        $region84: #{decoder_forward.1} parent=79 // pred_fallthru
          _
      $region80: #{decoder_forward.1} parent=5 // pred_fallthru
        _
    $region6: #{decoder_forward.1} parent=1 // loop_footer
      %s23 = sadd.s32 1, %s19
    $region7: #{decoder_forward.1} parent=1 // loop_footer_branch
      %18 = sbr.rel target = $region3
    $region8: #{decoder_forward.1} parent=1 // loop_exit
      _
    %2004 = vsyncpa [#allocation3], 1
    %s2005 = scalar_lea.sflag [#allocation3], 1
    %2006 = vsyncpa %s2005, 1

</llo_original>
